<compile_context>
chip_gen: v7x
topology: tpu7x:2x2x1
jax: 0.10.0
libtpu: 0.0.40
codegen_flags: <defaults>
</compile_context>

<pallas_src>
import functools

import jax
import jax.numpy as jnp
from jax.experimental import pallas as pl
from jax.experimental.pallas import tpu as pltpu


# ----------------------------------------------------------------------------
# In-kernel helpers
# ----------------------------------------------------------------------------
def _taps3x3(pad_ref, r0, r1, *, H, W, PAD, mask_l, mask_r):
    """The 9 shifted windows of a stride-1, zero-padded 3x3 conv.

    The conv input occupies pad_ref[r0:r1, PAD:PAD+H*W] in flattened
    (row-major y*W+x) spatial order; the PAD zero lanes on both sides provide
    the vertical halo.  Horizontal wrap-around of the +/-1 column taps is
    removed with mask_l / mask_r.  Returns a list of 9 (r1-r0, H*W) f32
    arrays, tap t = (dy+1)*3 + (dx+1).
    """
    HW = H * W
    taps = []
    for dy in (-1, 0, 1):
        for dx in (-1, 0, 1):
            d = dy * W + dx
            tap = pad_ref[r0:r1, PAD + d:PAD + d + HW]
            if dx == 1:
                tap = tap * mask_r
            elif dx == -1:
                tap = tap * mask_l
            taps.append(tap)
    return taps


def _cheap_dw(pad_ref, z, lo, wd_ref, bd_ref, *, relu, keep,
              H, W, PAD, mask_l, mask_r):
    """Cheap 3x3 depthwise conv of a GhostConv (VPU, f32).

    z is the full primary output (crep, HW); rows [lo:crep) already hold the
    primary output repeated per depthwise output channel (repeated-row trick),
    so the depthwise is 9 per-channel FMAs.  The FULL z is staged at scratch
    rows [0:crep) so rows [0:lo) remain available to the next stage's input.
    Returns the first `keep` depthwise output channels, (keep, HW) f32.
    """
    crep = z.shape[0]
    HW = H * W
    pad_ref[0:crep, PAD:PAD + HW] = z
    taps = _taps3x3(pad_ref, lo, crep, H=H, W=W, PAD=PAD,
                    mask_l=mask_l, mask_r=mask_r)
    acc = None
    for t, tap in enumerate(taps):
        term = wd_ref[t] * tap                    # (new_c, 1) * (new_c, HW)
        acc = term if acc is None else acc + term
    acc = acc + bd_ref[...]
    if relu:
        acc = jnp.maximum(acc, 0.0)
    return acc[0:keep]


# ----------------------------------------------------------------------------
# Fused GhostBottleneck kernel (block_b images per grid step)
# ----------------------------------------------------------------------------
def _ghost_bottleneck_kernel(
        x_ref,
        w1p_ref, b1p_ref, w1d_ref, b1d_ref,
        w2p_ref, b2p_ref, w2d_ref, b2d_ref,
        w3p_ref, b3p_ref, w3d_ref, b3d_ref,
        o_ref,
        pad_ref,
        *, H, W, PAD, dims, block_b):
    HW = H * W
    (i1, _n1, o1), (i2, _n2, o2), (i3, _n3, o3) = dims
    c_pad = pad_ref.shape[0]

    # Zero only the halo lanes; the interior is fully overwritten before every
    # tap read, so it never needs clearing.  (Done every step: with a
    # "parallel" grid each TensorCore owns its own scratch instance.)
    zeros_halo = jnp.zeros((c_pad, PAD), jnp.float32)
    pad_ref[:, 0:PAD] = zeros_halo
    pad_ref[:, PAD + HW:PAD + HW + PAD] = zeros_halo

    # Column-validity masks for the +/-1 horizontal taps in flattened space;
    # the vertical boundary is handled by the zero halo above.
    px = jax.lax.broadcasted_iota(jnp.int32, (1, HW), 1) % W
    mask_l = (px > 0).astype(jnp.float32)        # source column x-1 exists
    mask_r = (px < W - 1).astype(jnp.float32)    # source column x+1 exists
    cm = dict(H=H, W=W, PAD=PAD, mask_l=mask_l, mask_r=mask_r)

    for b in range(block_b):                     # static unroll over the block
        x_in = x_ref[b]                          # (C_in, HW) bf16

        # --- conv1: GhostConv(in->width), 1x1 primary off the bf16 input ----
        z1 = jnp.dot(w1p_ref[...], x_in,
                     preferred_element_type=jnp.float32) + b1p_ref[...]
        z1 = jnp.maximum(z1, 0.0)
        y1 = _cheap_dw(pad_ref, z1, i1, w1d_ref, b1d_ref, relu=True,
                       keep=o1 - i1, **cm)

        # --- conv2: GhostConv(width->width), 3x3 primary as ONE im2col dot --
        # Scratch rows [0:i1) already hold z1[0:i1] (staged by conv1's dw);
        # overwrite rows [i1:o1) with the cheap output to complete conv2's
        # input, gather the 9 shifted windows, and do a single K=9*o1 matmul.
        pad_ref[i1:o1, PAD:PAD + HW] = y1
        patch = jnp.concatenate(_taps3x3(pad_ref, 0, o1, **cm),
                                axis=0).astype(jnp.bfloat16)   # (9*o1, HW)
        z2 = jnp.dot(w2p_ref[...], patch,
                     preferred_element_type=jnp.float32) + b2p_ref[...]
        z2 = jnp.maximum(z2, 0.0)
        y2 = _cheap_dw(pad_ref, z2, i2, w2d_ref, b2d_ref, relu=True,
                       keep=o2 - i2, **cm)

        # --- conv3: GhostConv(width->out*exp), 1x1 primary, no act ----------
        # Final bottleneck BN is pre-folded into w3p rows [0:i3), b3p, w3d, b3d.
        pad_ref[i2:o2, PAD:PAD + HW] = y2
        cat3 = pad_ref[0:o2, PAD:PAD + HW].astype(jnp.bfloat16)
        z3 = jnp.dot(w3p_ref[...], cat3,
                     preferred_element_type=jnp.float32) + b3p_ref[...]
        y3 = _cheap_dw(pad_ref, z3, i3, w3d_ref, b3d_ref, relu=False,
                       keep=o3 - i3, **cm)

        # --- epilogue: +identity, ReLU (BN already folded) -------------------
        ident = x_in.astype(jnp.float32)
        o_ref[b, 0:i3, :] = jnp.maximum(z3[0:i3] + ident[0:i3], 0.0)
        o_ref[b, i3:o3, :] = jnp.maximum(y3 + ident[i3:o3], 0.0)


# ----------------------------------------------------------------------------
# Parameter construction (deterministic, synthetic)
# ----------------------------------------------------------------------------
def _make_bn(key, c, eps=1e-5):
    k1, k2, k3, k4 = jax.random.split(key, 4)
    gamma = 1.0 + 0.1 * jax.random.normal(k1, (c,), jnp.float32)
    beta = 0.05 * jax.random.normal(k2, (c,), jnp.float32)
    mean = 0.1 * jax.random.normal(k3, (c,), jnp.float32)
    var = 1.0 + 0.1 * jnp.abs(jax.random.normal(k4, (c,), jnp.float32))
    scale = gamma * jax.lax.rsqrt(var + eps)
    shift = beta - mean * scale
    return scale, shift


def make_ghost_conv_params(key, in_c, out_c, k, ratio=4, dw_k=3,
                           post_scale=None, post_shift=None):
    """Synthetic GhostConv parameters, packed for the fused kernel.

    post_scale/post_shift (length out_c) are an optional per-output-channel
    affine applied AFTER the GhostConv (used to fold the bottleneck-level BN
    into conv3); they are folded only into the channels that reach the output,
    never into the repeated rows feeding the depthwise conv.
    """
    assert dw_k == 3, "cheap depthwise kernel is fixed at 3x3"
    init_c = -(-out_c // ratio)               # ceil(out_c / ratio)
    new_c = init_c * (ratio - 1)
    m = ratio - 1
    crep = init_c + new_c
    k1, k2, k3, k4 = jax.random.split(key, 4)

    wp = 0.1 * jax.random.normal(k1, (init_c, in_c, k, k), jnp.float32)
    wc = 0.1 * jax.random.normal(k2, (new_c, 1, dw_k, dw_k), jnp.float32)
    sp, bp = _make_bn(k3, init_c)
    sc, bc = _make_bn(k4, new_c)

    if post_scale is None:
        post_scale = jnp.ones((out_c,), jnp.float32)
        post_shift = jnp.zeros((out_c,), jnp.float32)
    ps_prim, pb_prim = post_scale[:init_c], post_shift[:init_c]
    keep_c = out_c - init_c                   # cheap channels that reach output
    ps_cheap = jnp.concatenate([post_scale[init_c:out_c],
                                jnp.ones((new_c - keep_c,), jnp.float32)])
    pb_cheap = jnp.concatenate([post_shift[init_c:out_c],
                                jnp.zeros((new_c - keep_c,), jnp.float32)])

    # Primary: fold the conv's own BN scale; rows [0:init_c) additionally fold
    # the post affine; then append (ratio-1) repeated copies of every row so
    # the same matmul also emits the depthwise input (already in true
    # depthwise output-channel order, without the post affine).
    wp_bn = wp * sp[:, None, None, None]
    wp_rep = jnp.concatenate([wp_bn * ps_prim[:, None, None, None],
                              jnp.repeat(wp_bn, m, axis=0)], axis=0)
    bp_rep = jnp.concatenate([bp * ps_prim + pb_prim,
                              jnp.repeat(bp, m)])[:, None]
    if k == 1:
        wp_pack = wp_rep[:, :, 0, 0]                          # (crep, in_c)
    else:
        # im2col layout: column = tap*in_c + ci, tap t = (dy+1)*3 + (dx+1)
        wp_pack = jnp.transpose(wp_rep, (0, 2, 3, 1)).reshape(crep,
                                                              k * k * in_c)

    # Cheap depthwise: per-tap per-channel scalars, own BN + post folded in.
    wd = wc[:, 0] * (sc * ps_cheap)[:, None, None]            # (new_c, 3, 3)
    wd_pack = jnp.transpose(wd.reshape(new_c, dw_k * dw_k), (1, 0))[:, :, None]
    bd_pack = (bc * ps_cheap + pb_cheap)[:, None]

    return dict(
        # kernel-ready (packed, folded) parameters
        wp=wp_pack.astype(jnp.bfloat16), bp=bp_rep.astype(jnp.float32),
        wd=wd_pack.astype(jnp.float32), bd=bd_pack.astype(jnp.float32),
        init_c=init_c, new_c=new_c, out_c=out_c, k=k,
        # raw (PyTorch-layout) parameters, kept for the pure-JAX reference
        raw_wp=wp, raw_wc=wc, raw_sp=sp, raw_bp=bp, raw_sc=sc, raw_bc=bc,
    )


def make_ghost_bottleneck_params(key, in_chans, out_chans, stride=1, groups=1,
                                 width_per_group=64, base_width=64,
                                 expansion=4, ratio=4, dw_kernel_size=3):
    assert stride == 1, "stride != 1 requires a down_sample branch (TODO)"
    width = int(out_chans * (width_per_group / base_width)) * groups
    c_out = out_chans * expansion
    k1, k2, k3, k4 = jax.random.split(key, 4)
    bn_s, bn_b = _make_bn(k4, c_out)
    return dict(
        conv1=make_ghost_conv_params(k1, in_chans, width, 1, ratio,
                                     dw_kernel_size),
        conv2=make_ghost_conv_params(k2, width, width, 3, ratio,
                                     dw_kernel_size),
        # The final bottleneck BN is folded host-side into conv3's packing.
        conv3=make_ghost_conv_params(k3, width, c_out, 1, ratio,
                                     dw_kernel_size,
                                     post_scale=bn_s, post_shift=bn_b),
        stride=stride,
        bn_s=bn_s, bn_b=bn_b,      # raw, used only by the pure-JAX reference
    )


# ----------------------------------------------------------------------------
# Wrapper
# ----------------------------------------------------------------------------
def ghost_bottleneck_forward(x_nchw, params):
    """Fused GhostBottleneck forward.  x_nchw: (N, C_in, H, W) float32."""
    N, c_in, H, W = x_nchw.shape
    HW = H * W
    p1, p2, p3 = params["conv1"], params["conv2"], params["conv3"]
    c_out = p3["out_c"]
    assert params["stride"] == 1
    assert c_in == c_out, (
        "identity residual requires in_chans == out_chans * expansion")

    PAD = W + 1                                   # halo lanes on each side
    dims = tuple((p["init_c"], p["new_c"], p["out_c"]) for p in (p1, p2, p3))
    c_pad = max(p["init_c"] + p["new_c"] for p in (p1, p2, p3))

    # block_b images per grid step; keep >= 2 steps so a v7x megacore gets
    # work on both TensorCores (block_b = 1 for N = 2).
    block_b = max(1, N // 2)
    while N % block_b:
        block_b -= 1

    # bf16 activations at the pallas boundary halve the HBM read; depthwise /
    # epilogue math stays f32 inside the kernel (no bf16 VALU on v5e).
    x_flat = x_nchw.reshape(N, c_in, HW).astype(jnp.bfloat16)

    weights = [p1["wp"], p1["bp"], p1["wd"], p1["bd"],
               p2["wp"], p2["bp"], p2["wd"], p2["bd"],
               p3["wp"], p3["bp"], p3["wd"], p3["bd"]]

    def full_spec(a):
        return pl.BlockSpec(a.shape, lambda n, nd=a.ndim: (0,) * nd)

    kernel = functools.partial(_ghost_bottleneck_kernel,
                               H=H, W=W, PAD=PAD, dims=dims, block_b=block_b)

    out = pl.pallas_call(
        kernel,
        out_shape=jax.ShapeDtypeStruct((N, c_out, HW), jnp.float32),
        grid=(N // block_b,),
        in_specs=[pl.BlockSpec((block_b, c_in, HW), lambda n: (n, 0, 0))]
                 + [full_spec(a) for a in weights],
        out_specs=pl.BlockSpec((block_b, c_out, HW), lambda n: (n, 0, 0)),
        scratch_shapes=[pltpu.VMEM((c_pad, HW + 2 * PAD), jnp.float32)],
        compiler_params=pltpu.CompilerParams(
            dimension_semantics=("parallel",)),
    )(x_flat, *weights)

    return out.reshape(N, c_out, H, W)


# ----------------------------------------------------------------------------
# Pure-JAX (XLA conv) reference for correctness checking
# ----------------------------------------------------------------------------
def _reference_ghost_conv(x, p, relu):
    dn = ("NCHW", "OIHW", "NCHW")
    hp = jax.lax.Precision.HIGHEST
    pd = p["k"] // 2
    x1 = jax.lax.conv_general_dilated(
        x, p["raw_wp"], (1, 1), [(pd, pd), (pd, pd)],
        dimension_numbers=dn, precision=hp)
    x1 = x1 * p["raw_sp"][None, :, None, None] + p["raw_bp"][None, :, None, None]
    if relu:
        x1 = jnp.maximum(x1, 0.0)
    x2 = jax.lax.conv_general_dilated(
        x1, p["raw_wc"], (1, 1), [(1, 1), (1, 1)], dimension_numbers=dn,
        feature_group_count=p["init_c"], precision=hp)
    x2 = x2 * p["raw_sc"][None, :, None, None] + p["raw_bc"][None, :, None, None]
    if relu:
        x2 = jnp.maximum(x2, 0.0)
    return jnp.concatenate([x1, x2], axis=1)[:, :p["out_c"]]


def reference_forward(x_nchw, params):
    xb = x_nchw.astype(jnp.bfloat16).astype(jnp.float32)  # match boundary cast
    y = _reference_ghost_conv(xb, params["conv1"], True)
    y = _reference_ghost_conv(y, params["conv2"], True)
    y = _reference_ghost_conv(y, params["conv3"], False)
    s = params["bn_s"][None, :, None, None]
    b = params["bn_b"][None, :, None, None]
    return jnp.maximum(y * s + b + xb, 0.0)


# ----------------------------------------------------------------------------
if __name__ == "__main__":
    key = jax.random.PRNGKey(0)
    kx, kp = jax.random.split(key)

    # in_chans must equal out_chans * expansion so the identity residual is
    # valid (stride=1, down_sample=None), exactly as the PyTorch module needs.
    N, in_chans, H, W = 2, 32, 16, 16
    out_chans = 8

    x = jax.random.normal(kx, (N, in_chans, H, W), jnp.float32)
    params = make_ghost_bottleneck_params(kp, in_chans, out_chans, stride=1)

    out = jax.block_until_ready(ghost_bottleneck_forward(x, params))
    ref = jax.block_until_ready(reference_forward(x, params))

    assert out.shape == (N, out_chans * 4, H, W)
    assert bool(jnp.all(jnp.isfinite(out)))
    assert bool(jnp.all(out >= 0.0))          # final ReLU
    err = float(jnp.max(jnp.abs(out - ref)))
    assert err < 5e-2, f"max |pallas - reference| = {err}"
    print("KERNEL_OK")
</pallas_src>

<mosaic_0001>
module attributes {stable_mosaic.version = 11 : i64} {
  func.func @_ghost_bottleneck_kernel(%arg0: i32, %arg1: memref<1x32x256xbf16, #tpu.memory_space<vmem>>, %arg2: memref<8x32xbf16, #tpu.memory_space<vmem>>, %arg3: memref<8x1xf32, #tpu.memory_space<vmem>>, %arg4: memref<9x6x1xf32, #tpu.memory_space<vmem>>, %arg5: memref<6x1xf32, #tpu.memory_space<vmem>>, %arg6: memref<8x72xbf16, #tpu.memory_space<vmem>>, %arg7: memref<8x1xf32, #tpu.memory_space<vmem>>, %arg8: memref<9x6x1xf32, #tpu.memory_space<vmem>>, %arg9: memref<6x1xf32, #tpu.memory_space<vmem>>, %arg10: memref<32x8xbf16, #tpu.memory_space<vmem>>, %arg11: memref<32x1xf32, #tpu.memory_space<vmem>>, %arg12: memref<9x24x1xf32, #tpu.memory_space<vmem>>, %arg13: memref<24x1xf32, #tpu.memory_space<vmem>>, %arg14: memref<1x32x256xf32, #tpu.memory_space<vmem>>, %arg15: memref<32x290xf32, #tpu.memory_space<vmem>>) attributes {dimension_semantics = [#tpu.dimension_semantics<parallel>], iteration_bounds = array<i64: 2>, scalar_prefetch = 0 : i64, scratch_operands = 1 : i64, tpu.core_type = #tpu.core_type<tc>, window_params = [{transform_indices = @transform_0, window_bounds = array<i64: 1, 32, 256>}, {pipeline_mode = #tpu.pipeline_mode<synchronous>, transform_indices = @transform_1, window_bounds = array<i64: 8, 32>}, {pipeline_mode = #tpu.pipeline_mode<synchronous>, transform_indices = @transform_2, window_bounds = array<i64: 8, 1>}, {pipeline_mode = #tpu.pipeline_mode<synchronous>, transform_indices = @transform_3, window_bounds = array<i64: 9, 6, 1>}, {pipeline_mode = #tpu.pipeline_mode<synchronous>, transform_indices = @transform_4, window_bounds = array<i64: 6, 1>}, {pipeline_mode = #tpu.pipeline_mode<synchronous>, transform_indices = @transform_5, window_bounds = array<i64: 8, 72>}, {pipeline_mode = #tpu.pipeline_mode<synchronous>, transform_indices = @transform_6, window_bounds = array<i64: 8, 1>}, {pipeline_mode = #tpu.pipeline_mode<synchronous>, transform_indices = @transform_7, window_bounds = array<i64: 9, 6, 1>}, {pipeline_mode = #tpu.pipeline_mode<synchronous>, transform_indices = @transform_8, window_bounds = array<i64: 6, 1>}, {pipeline_mode = #tpu.pipeline_mode<synchronous>, transform_indices = @transform_9, window_bounds = array<i64: 32, 8>}, {pipeline_mode = #tpu.pipeline_mode<synchronous>, transform_indices = @transform_10, window_bounds = array<i64: 32, 1>}, {pipeline_mode = #tpu.pipeline_mode<synchronous>, transform_indices = @transform_11, window_bounds = array<i64: 9, 24, 1>}, {pipeline_mode = #tpu.pipeline_mode<synchronous>, transform_indices = @transform_12, window_bounds = array<i64: 24, 1>}, {transform_indices = @transform_13, window_bounds = array<i64: 1, 32, 256>}]} {
    %cst = arith.constant 0.000000e+00 : f32
    %0 = vector.broadcast %cst : f32 to vector<32x17xf32>
    %c0 = arith.constant 0 : index
    %c0_0 = arith.constant 0 : index
    %1 = vector.load %arg15[%c0, %c0_0] : memref<32x290xf32, #tpu.memory_space<vmem>>, vector<32x17xf32>
    tpu.vector_store %arg15[%c0, %c0_0], %0 {strides = array<i32>} : memref<32x290xf32, #tpu.memory_space<vmem>>, vector<32x17xf32>,
    %c0_1 = arith.constant 0 : index
    %c273 = arith.constant 273 : index
    %2 = vector.load %arg15[%c0_1, %c273] : memref<32x290xf32, #tpu.memory_space<vmem>>, vector<32x17xf32>
    tpu.vector_store %arg15[%c0_1, %c273], %0 {strides = array<i32>} : memref<32x290xf32, #tpu.memory_space<vmem>>, vector<32x17xf32>,
    %3 = tpu.iota {dimensions = array<i32: 1>} : vector<1x256xi32>
    %c16_i32 = arith.constant 16 : i32
    %c0_i32 = arith.constant 0 : i32
    %4 = arith.cmpi eq, %c16_i32, %c0_i32 : i32
    %c1_i32 = arith.constant 1 : i32
    %5 = arith.select %4, %c1_i32, %c16_i32 : i32
    %6 = vector.broadcast %5 : i32 to vector<1x256xi32>
    %7 = arith.remsi %3, %6 : vector<1x256xi32>
    %c0_i32_2 = arith.constant 0 : i32
    %8 = vector.broadcast %c0_i32_2 : i32 to vector<1x256xi32>
    %9 = arith.cmpi ne, %7, %8 : vector<1x256xi32>
    %c0_i32_3 = arith.constant 0 : i32
    %10 = vector.broadcast %c0_i32_3 : i32 to vector<1x256xi32>
    %11 = arith.cmpi slt, %7, %10 : vector<1x256xi32>
    %c0_i32_4 = arith.constant 0 : i32
    %12 = arith.cmpi slt, %5, %c0_i32_4 : i32
    %13 = vector.broadcast %12 : i1 to vector<1x256xi1>
    %14 = vector.broadcast %13 : vector<1x256xi1> to vector<1x256xi1>
    %15 = arith.xori %11, %14 : vector<1x256xi1>
    %16 = arith.andi %15, %9 : vector<1x256xi1>
    %17 = vector.broadcast %5 : i32 to vector<1x256xi32>
    %18 = arith.addi %7, %17 : vector<1x256xi32>
    %19 = arith.select %16, %18, %7 : vector<1x256xi1>, vector<1x256xi32>
    %c0_i32_5 = arith.constant 0 : i32
    %20 = vector.broadcast %c0_i32_5 : i32 to vector<1x256xi32>
    %21 = arith.cmpi sgt, %19, %20 : vector<1x256xi32>
    %22 = arith.extui %21 : vector<1x256xi1> to vector<1x256xi32>
    %23 = arith.sitofp %22 : vector<1x256xi32> to vector<1x256xf32>
    %c15_i32 = arith.constant 15 : i32
    %24 = vector.broadcast %c15_i32 : i32 to vector<1x256xi32>
    %25 = arith.cmpi slt, %19, %24 : vector<1x256xi32>
    %26 = arith.extui %25 : vector<1x256xi1> to vector<1x256xi32>
    %27 = arith.sitofp %26 : vector<1x256xi32> to vector<1x256xf32>
    %c0_6 = arith.constant 0 : index
    %c0_7 = arith.constant 0 : index
    %c0_8 = arith.constant 0 : index
    %28 = vector.load %arg1[%c0_6, %c0_7, %c0_8] : memref<1x32x256xbf16, #tpu.memory_space<vmem>>, vector<1x32x256xbf16>
    %29 = vector.shape_cast %28 : vector<1x32x256xbf16> to vector<32x256xbf16>
    %c0_9 = arith.constant 0 : index
    %c0_10 = arith.constant 0 : index
    %30 = vector.load %arg2[%c0_9, %c0_10] : memref<8x32xbf16, #tpu.memory_space<vmem>>, vector<8x32xbf16>
    %cst_11 = arith.constant dense<0.000000e+00> : vector<8x256xf32>
    %31 = tpu.matmul %30, %29, %cst_11 {dimension_numbers = #tpu.dot_dimension_numbers<[1], [0], [0], [1], [0, 0, 1, 1], [], []>} : vector<8x32xbf16>, vector<32x256xbf16>, vector<8x256xf32> -> vector<8x256xf32>
    %c0_12 = arith.constant 0 : index
    %c0_13 = arith.constant 0 : index
    %32 = vector.load %arg3[%c0_12, %c0_13] : memref<8x1xf32, #tpu.memory_space<vmem>>, vector<8x1xf32>
    %33 = vector.broadcast %32 : vector<8x1xf32> to vector<8x256xf32>
    %34 = arith.addf %31, %33 : vector<8x256xf32>
    %cst_14 = arith.constant 0.000000e+00 : f32
    %35 = vector.broadcast %cst_14 : f32 to vector<8x256xf32>
    %36 = arith.maximumf %34, %35 : vector<8x256xf32>
    %c0_15 = arith.constant 0 : index
    %c17 = arith.constant 17 : index
    %37 = vector.load %arg15[%c0_15, %c17] : memref<32x290xf32, #tpu.memory_space<vmem>>, vector<8x256xf32>
    tpu.vector_store %arg15[%c0_15, %c17], %36 {strides = array<i32>} : memref<32x290xf32, #tpu.memory_space<vmem>>, vector<8x256xf32>,
    %c2 = arith.constant 2 : index
    %c0_16 = arith.constant 0 : index
    %38 = vector.load %arg15[%c2, %c0_16] : memref<32x290xf32, #tpu.memory_space<vmem>>, vector<6x256xf32>
    %39 = vector.broadcast %23 : vector<1x256xf32> to vector<6x256xf32>
    %40 = arith.mulf %38, %39 : vector<6x256xf32>
    %c2_17 = arith.constant 2 : index
    %c1 = arith.constant 1 : index
    %41 = vector.load %arg15[%c2_17, %c1] : memref<32x290xf32, #tpu.memory_space<vmem>>, vector<6x256xf32>
    %c2_18 = arith.constant 2 : index
    %c2_19 = arith.constant 2 : index
    %42 = vector.load %arg15[%c2_18, %c2_19] : memref<32x290xf32, #tpu.memory_space<vmem>>, vector<6x256xf32>
    %43 = vector.broadcast %27 : vector<1x256xf32> to vector<6x256xf32>
    %44 = arith.mulf %42, %43 : vector<6x256xf32>
    %c2_20 = arith.constant 2 : index
    %c16 = arith.constant 16 : index
    %45 = vector.load %arg15[%c2_20, %c16] : memref<32x290xf32, #tpu.memory_space<vmem>>, vector<6x256xf32>
    %46 = vector.broadcast %23 : vector<1x256xf32> to vector<6x256xf32>
    %47 = arith.mulf %45, %46 : vector<6x256xf32>
    %c2_21 = arith.constant 2 : index
    %c17_22 = arith.constant 17 : index
    %48 = vector.load %arg15[%c2_21, %c17_22] : memref<32x290xf32, #tpu.memory_space<vmem>>, vector<6x256xf32>
    %c2_23 = arith.constant 2 : index
    %c18 = arith.constant 18 : index
    %49 = vector.load %arg15[%c2_23, %c18] : memref<32x290xf32, #tpu.memory_space<vmem>>, vector<6x256xf32>
    %50 = vector.broadcast %27 : vector<1x256xf32> to vector<6x256xf32>
    %51 = arith.mulf %49, %50 : vector<6x256xf32>
    %c2_24 = arith.constant 2 : index
    %c32 = arith.constant 32 : index
    %52 = vector.load %arg15[%c2_24, %c32] : memref<32x290xf32, #tpu.memory_space<vmem>>, vector<6x256xf32>
    %53 = vector.broadcast %23 : vector<1x256xf32> to vector<6x256xf32>
    %54 = arith.mulf %52, %53 : vector<6x256xf32>
    %c2_25 = arith.constant 2 : index
    %c33 = arith.constant 33 : index
    %55 = vector.load %arg15[%c2_25, %c33] : memref<32x290xf32, #tpu.memory_space<vmem>>, vector<6x256xf32>
    %c2_26 = arith.constant 2 : index
    %c34 = arith.constant 34 : index
    %56 = vector.load %arg15[%c2_26, %c34] : memref<32x290xf32, #tpu.memory_space<vmem>>, vector<6x256xf32>
    %57 = vector.broadcast %27 : vector<1x256xf32> to vector<6x256xf32>
    %58 = arith.mulf %56, %57 : vector<6x256xf32>
    %c0_27 = arith.constant 0 : index
    %c0_28 = arith.constant 0 : index
    %c0_29 = arith.constant 0 : index
    %59 = vector.load %arg4[%c0_27, %c0_28, %c0_29] : memref<9x6x1xf32, #tpu.memory_space<vmem>>, vector<1x6x1xf32>
    %60 = vector.shape_cast %59 : vector<1x6x1xf32> to vector<6x1xf32>
    %61 = vector.broadcast %60 : vector<6x1xf32> to vector<6x256xf32>
    %62 = arith.mulf %61, %40 : vector<6x256xf32>
    %c1_30 = arith.constant 1 : index
    %c0_31 = arith.constant 0 : index
    %c0_32 = arith.constant 0 : index
    %63 = vector.load %arg4[%c1_30, %c0_31, %c0_32] : memref<9x6x1xf32, #tpu.memory_space<vmem>>, vector<1x6x1xf32>
    %64 = vector.shape_cast %63 : vector<1x6x1xf32> to vector<6x1xf32>
    %65 = vector.broadcast %64 : vector<6x1xf32> to vector<6x256xf32>
    %66 = arith.mulf %65, %41 : vector<6x256xf32>
    %67 = arith.addf %62, %66 : vector<6x256xf32>
    %c2_33 = arith.constant 2 : index
    %c0_34 = arith.constant 0 : index
    %c0_35 = arith.constant 0 : index
    %68 = vector.load %arg4[%c2_33, %c0_34, %c0_35] : memref<9x6x1xf32, #tpu.memory_space<vmem>>, vector<1x6x1xf32>
    %69 = vector.shape_cast %68 : vector<1x6x1xf32> to vector<6x1xf32>
    %70 = vector.broadcast %69 : vector<6x1xf32> to vector<6x256xf32>
    %71 = arith.mulf %70, %44 : vector<6x256xf32>
    %72 = arith.addf %67, %71 : vector<6x256xf32>
    %c3 = arith.constant 3 : index
    %c0_36 = arith.constant 0 : index
    %c0_37 = arith.constant 0 : index
    %73 = vector.load %arg4[%c3, %c0_36, %c0_37] : memref<9x6x1xf32, #tpu.memory_space<vmem>>, vector<1x6x1xf32>
    %74 = vector.shape_cast %73 : vector<1x6x1xf32> to vector<6x1xf32>
    %75 = vector.broadcast %74 : vector<6x1xf32> to vector<6x256xf32>
    %76 = arith.mulf %75, %47 : vector<6x256xf32>
    %77 = arith.addf %72, %76 : vector<6x256xf32>
    %c4 = arith.constant 4 : index
    %c0_38 = arith.constant 0 : index
    %c0_39 = arith.constant 0 : index
    %78 = vector.load %arg4[%c4, %c0_38, %c0_39] : memref<9x6x1xf32, #tpu.memory_space<vmem>>, vector<1x6x1xf32>
    %79 = vector.shape_cast %78 : vector<1x6x1xf32> to vector<6x1xf32>
    %80 = vector.broadcast %79 : vector<6x1xf32> to vector<6x256xf32>
    %81 = arith.mulf %80, %48 : vector<6x256xf32>
    %82 = arith.addf %77, %81 : vector<6x256xf32>
    %c5 = arith.constant 5 : index
    %c0_40 = arith.constant 0 : index
    %c0_41 = arith.constant 0 : index
    %83 = vector.load %arg4[%c5, %c0_40, %c0_41] : memref<9x6x1xf32, #tpu.memory_space<vmem>>, vector<1x6x1xf32>
    %84 = vector.shape_cast %83 : vector<1x6x1xf32> to vector<6x1xf32>
    %85 = vector.broadcast %84 : vector<6x1xf32> to vector<6x256xf32>
    %86 = arith.mulf %85, %51 : vector<6x256xf32>
    %87 = arith.addf %82, %86 : vector<6x256xf32>
    %c6 = arith.constant 6 : index
    %c0_42 = arith.constant 0 : index
    %c0_43 = arith.constant 0 : index
    %88 = vector.load %arg4[%c6, %c0_42, %c0_43] : memref<9x6x1xf32, #tpu.memory_space<vmem>>, vector<1x6x1xf32>
    %89 = vector.shape_cast %88 : vector<1x6x1xf32> to vector<6x1xf32>
    %90 = vector.broadcast %89 : vector<6x1xf32> to vector<6x256xf32>
    %91 = arith.mulf %90, %54 : vector<6x256xf32>
    %92 = arith.addf %87, %91 : vector<6x256xf32>
    %c7 = arith.constant 7 : index
    %c0_44 = arith.constant 0 : index
    %c0_45 = arith.constant 0 : index
    %93 = vector.load %arg4[%c7, %c0_44, %c0_45] : memref<9x6x1xf32, #tpu.memory_space<vmem>>, vector<1x6x1xf32>
    %94 = vector.shape_cast %93 : vector<1x6x1xf32> to vector<6x1xf32>
    %95 = vector.broadcast %94 : vector<6x1xf32> to vector<6x256xf32>
    %96 = arith.mulf %95, %55 : vector<6x256xf32>
    %97 = arith.addf %92, %96 : vector<6x256xf32>
    %c8 = arith.constant 8 : index
    %c0_46 = arith.constant 0 : index
    %c0_47 = arith.constant 0 : index
    %98 = vector.load %arg4[%c8, %c0_46, %c0_47] : memref<9x6x1xf32, #tpu.memory_space<vmem>>, vector<1x6x1xf32>
    %99 = vector.shape_cast %98 : vector<1x6x1xf32> to vector<6x1xf32>
    %100 = vector.broadcast %99 : vector<6x1xf32> to vector<6x256xf32>
    %101 = arith.mulf %100, %58 : vector<6x256xf32>
    %102 = arith.addf %97, %101 : vector<6x256xf32>
    %c0_48 = arith.constant 0 : index
    %c0_49 = arith.constant 0 : index
    %103 = vector.load %arg5[%c0_48, %c0_49] : memref<6x1xf32, #tpu.memory_space<vmem>>, vector<6x1xf32>
    %104 = vector.broadcast %103 : vector<6x1xf32> to vector<6x256xf32>
    %105 = arith.addf %102, %104 : vector<6x256xf32>
    %cst_50 = arith.constant 0.000000e+00 : f32
    %106 = vector.broadcast %cst_50 : f32 to vector<6x256xf32>
    %107 = arith.maximumf %105, %106 : vector<6x256xf32>
    %c2_51 = arith.constant 2 : index
    %c17_52 = arith.constant 17 : index
    %108 = vector.load %arg15[%c2_51, %c17_52] : memref<32x290xf32, #tpu.memory_space<vmem>>, vector<6x256xf32>
    tpu.vector_store %arg15[%c2_51, %c17_52], %107 {strides = array<i32>} : memref<32x290xf32, #tpu.memory_space<vmem>>, vector<6x256xf32>,
    %c0_53 = arith.constant 0 : index
    %c0_54 = arith.constant 0 : index
    %109 = vector.load %arg15[%c0_53, %c0_54] : memref<32x290xf32, #tpu.memory_space<vmem>>, vector<8x256xf32>
    %110 = vector.broadcast %23 : vector<1x256xf32> to vector<8x256xf32>
    %111 = arith.mulf %109, %110 : vector<8x256xf32>
    %c0_55 = arith.constant 0 : index
    %c1_56 = arith.constant 1 : index
    %112 = vector.load %arg15[%c0_55, %c1_56] : memref<32x290xf32, #tpu.memory_space<vmem>>, vector<8x256xf32>
    %c0_57 = arith.constant 0 : index
    %c2_58 = arith.constant 2 : index
    %113 = vector.load %arg15[%c0_57, %c2_58] : memref<32x290xf32, #tpu.memory_space<vmem>>, vector<8x256xf32>
    %114 = vector.broadcast %27 : vector<1x256xf32> to vector<8x256xf32>
    %115 = arith.mulf %113, %114 : vector<8x256xf32>
    %c0_59 = arith.constant 0 : index
    %c16_60 = arith.constant 16 : index
    %116 = vector.load %arg15[%c0_59, %c16_60] : memref<32x290xf32, #tpu.memory_space<vmem>>, vector<8x256xf32>
    %117 = vector.broadcast %23 : vector<1x256xf32> to vector<8x256xf32>
    %118 = arith.mulf %116, %117 : vector<8x256xf32>
    %c0_61 = arith.constant 0 : index
    %c17_62 = arith.constant 17 : index
    %119 = vector.load %arg15[%c0_61, %c17_62] : memref<32x290xf32, #tpu.memory_space<vmem>>, vector<8x256xf32>
    %c0_63 = arith.constant 0 : index
    %c18_64 = arith.constant 18 : index
    %120 = vector.load %arg15[%c0_63, %c18_64] : memref<32x290xf32, #tpu.memory_space<vmem>>, vector<8x256xf32>
    %121 = vector.broadcast %27 : vector<1x256xf32> to vector<8x256xf32>
    %122 = arith.mulf %120, %121 : vector<8x256xf32>
    %c0_65 = arith.constant 0 : index
    %c32_66 = arith.constant 32 : index
    %123 = vector.load %arg15[%c0_65, %c32_66] : memref<32x290xf32, #tpu.memory_space<vmem>>, vector<8x256xf32>
    %124 = vector.broadcast %23 : vector<1x256xf32> to vector<8x256xf32>
    %125 = arith.mulf %123, %124 : vector<8x256xf32>
    %c0_67 = arith.constant 0 : index
    %c33_68 = arith.constant 33 : index
    %126 = vector.load %arg15[%c0_67, %c33_68] : memref<32x290xf32, #tpu.memory_space<vmem>>, vector<8x256xf32>
    %c0_69 = arith.constant 0 : index
    %c34_70 = arith.constant 34 : index
    %127 = vector.load %arg15[%c0_69, %c34_70] : memref<32x290xf32, #tpu.memory_space<vmem>>, vector<8x256xf32>
    %128 = vector.broadcast %27 : vector<1x256xf32> to vector<8x256xf32>
    %129 = arith.mulf %127, %128 : vector<8x256xf32>
    %130 = tpu.concatenate %111, %112, %115, %118, %119, %122, %125, %126, %129 in 0 : vector<8x256xf32>, vector<8x256xf32>, vector<8x256xf32>, vector<8x256xf32>, vector<8x256xf32>, vector<8x256xf32>, vector<8x256xf32>, vector<8x256xf32>, vector<8x256xf32> -> vector<72x256xf32>
    %131 = arith.truncf %130 : vector<72x256xf32> to vector<72x256xbf16>
    %c0_71 = arith.constant 0 : index
    %c0_72 = arith.constant 0 : index
    %132 = vector.load %arg6[%c0_71, %c0_72] : memref<8x72xbf16, #tpu.memory_space<vmem>>, vector<8x72xbf16>
    %cst_73 = arith.constant dense<0.000000e+00> : vector<8x256xf32>
    %133 = tpu.matmul %132, %131, %cst_73 {dimension_numbers = #tpu.dot_dimension_numbers<[1], [0], [0], [1], [0, 0, 1, 1], [], []>} : vector<8x72xbf16>, vector<72x256xbf16>, vector<8x256xf32> -> vector<8x256xf32>
    %c0_74 = arith.constant 0 : index
    %c0_75 = arith.constant 0 : index
    %134 = vector.load %arg7[%c0_74, %c0_75] : memref<8x1xf32, #tpu.memory_space<vmem>>, vector<8x1xf32>
    %135 = vector.broadcast %134 : vector<8x1xf32> to vector<8x256xf32>
    %136 = arith.addf %133, %135 : vector<8x256xf32>
    %cst_76 = arith.constant 0.000000e+00 : f32
    %137 = vector.broadcast %cst_76 : f32 to vector<8x256xf32>
    %138 = arith.maximumf %136, %137 : vector<8x256xf32>
    %c0_77 = arith.constant 0 : index
    %c17_78 = arith.constant 17 : index
    %139 = vector.load %arg15[%c0_77, %c17_78] : memref<32x290xf32, #tpu.memory_space<vmem>>, vector<8x256xf32>
    tpu.vector_store %arg15[%c0_77, %c17_78], %138 {strides = array<i32>} : memref<32x290xf32, #tpu.memory_space<vmem>>, vector<8x256xf32>,
    %c2_79 = arith.constant 2 : index
    %c0_80 = arith.constant 0 : index
    %140 = vector.load %arg15[%c2_79, %c0_80] : memref<32x290xf32, #tpu.memory_space<vmem>>, vector<6x256xf32>
    %141 = vector.broadcast %23 : vector<1x256xf32> to vector<6x256xf32>
    %142 = arith.mulf %140, %141 : vector<6x256xf32>
    %c2_81 = arith.constant 2 : index
    %c1_82 = arith.constant 1 : index
    %143 = vector.load %arg15[%c2_81, %c1_82] : memref<32x290xf32, #tpu.memory_space<vmem>>, vector<6x256xf32>
    %c2_83 = arith.constant 2 : index
    %c2_84 = arith.constant 2 : index
    %144 = vector.load %arg15[%c2_83, %c2_84] : memref<32x290xf32, #tpu.memory_space<vmem>>, vector<6x256xf32>
    %145 = vector.broadcast %27 : vector<1x256xf32> to vector<6x256xf32>
    %146 = arith.mulf %144, %145 : vector<6x256xf32>
    %c2_85 = arith.constant 2 : index
    %c16_86 = arith.constant 16 : index
    %147 = vector.load %arg15[%c2_85, %c16_86] : memref<32x290xf32, #tpu.memory_space<vmem>>, vector<6x256xf32>
    %148 = vector.broadcast %23 : vector<1x256xf32> to vector<6x256xf32>
    %149 = arith.mulf %147, %148 : vector<6x256xf32>
    %c2_87 = arith.constant 2 : index
    %c17_88 = arith.constant 17 : index
    %150 = vector.load %arg15[%c2_87, %c17_88] : memref<32x290xf32, #tpu.memory_space<vmem>>, vector<6x256xf32>
    %c2_89 = arith.constant 2 : index
    %c18_90 = arith.constant 18 : index
    %151 = vector.load %arg15[%c2_89, %c18_90] : memref<32x290xf32, #tpu.memory_space<vmem>>, vector<6x256xf32>
    %152 = vector.broadcast %27 : vector<1x256xf32> to vector<6x256xf32>
    %153 = arith.mulf %151, %152 : vector<6x256xf32>
    %c2_91 = arith.constant 2 : index
    %c32_92 = arith.constant 32 : index
    %154 = vector.load %arg15[%c2_91, %c32_92] : memref<32x290xf32, #tpu.memory_space<vmem>>, vector<6x256xf32>
    %155 = vector.broadcast %23 : vector<1x256xf32> to vector<6x256xf32>
    %156 = arith.mulf %154, %155 : vector<6x256xf32>
    %c2_93 = arith.constant 2 : index
    %c33_94 = arith.constant 33 : index
    %157 = vector.load %arg15[%c2_93, %c33_94] : memref<32x290xf32, #tpu.memory_space<vmem>>, vector<6x256xf32>
    %c2_95 = arith.constant 2 : index
    %c34_96 = arith.constant 34 : index
    %158 = vector.load %arg15[%c2_95, %c34_96] : memref<32x290xf32, #tpu.memory_space<vmem>>, vector<6x256xf32>
    %159 = vector.broadcast %27 : vector<1x256xf32> to vector<6x256xf32>
    %160 = arith.mulf %158, %159 : vector<6x256xf32>
    %c0_97 = arith.constant 0 : index
    %c0_98 = arith.constant 0 : index
    %c0_99 = arith.constant 0 : index
    %161 = vector.load %arg8[%c0_97, %c0_98, %c0_99] : memref<9x6x1xf32, #tpu.memory_space<vmem>>, vector<1x6x1xf32>
    %162 = vector.shape_cast %161 : vector<1x6x1xf32> to vector<6x1xf32>
    %163 = vector.broadcast %162 : vector<6x1xf32> to vector<6x256xf32>
    %164 = arith.mulf %163, %142 : vector<6x256xf32>
    %c1_100 = arith.constant 1 : index
    %c0_101 = arith.constant 0 : index
    %c0_102 = arith.constant 0 : index
    %165 = vector.load %arg8[%c1_100, %c0_101, %c0_102] : memref<9x6x1xf32, #tpu.memory_space<vmem>>, vector<1x6x1xf32>
    %166 = vector.shape_cast %165 : vector<1x6x1xf32> to vector<6x1xf32>
    %167 = vector.broadcast %166 : vector<6x1xf32> to vector<6x256xf32>
    %168 = arith.mulf %167, %143 : vector<6x256xf32>
    %169 = arith.addf %164, %168 : vector<6x256xf32>
    %c2_103 = arith.constant 2 : index
    %c0_104 = arith.constant 0 : index
    %c0_105 = arith.constant 0 : index
    %170 = vector.load %arg8[%c2_103, %c0_104, %c0_105] : memref<9x6x1xf32, #tpu.memory_space<vmem>>, vector<1x6x1xf32>
    %171 = vector.shape_cast %170 : vector<1x6x1xf32> to vector<6x1xf32>
    %172 = vector.broadcast %171 : vector<6x1xf32> to vector<6x256xf32>
    %173 = arith.mulf %172, %146 : vector<6x256xf32>
    %174 = arith.addf %169, %173 : vector<6x256xf32>
    %c3_106 = arith.constant 3 : index
    %c0_107 = arith.constant 0 : index
    %c0_108 = arith.constant 0 : index
    %175 = vector.load %arg8[%c3_106, %c0_107, %c0_108] : memref<9x6x1xf32, #tpu.memory_space<vmem>>, vector<1x6x1xf32>
    %176 = vector.shape_cast %175 : vector<1x6x1xf32> to vector<6x1xf32>
    %177 = vector.broadcast %176 : vector<6x1xf32> to vector<6x256xf32>
    %178 = arith.mulf %177, %149 : vector<6x256xf32>
    %179 = arith.addf %174, %178 : vector<6x256xf32>
    %c4_109 = arith.constant 4 : index
    %c0_110 = arith.constant 0 : index
    %c0_111 = arith.constant 0 : index
    %180 = vector.load %arg8[%c4_109, %c0_110, %c0_111] : memref<9x6x1xf32, #tpu.memory_space<vmem>>, vector<1x6x1xf32>
    %181 = vector.shape_cast %180 : vector<1x6x1xf32> to vector<6x1xf32>
    %182 = vector.broadcast %181 : vector<6x1xf32> to vector<6x256xf32>
    %183 = arith.mulf %182, %150 : vector<6x256xf32>
    %184 = arith.addf %179, %183 : vector<6x256xf32>
    %c5_112 = arith.constant 5 : index
    %c0_113 = arith.constant 0 : index
    %c0_114 = arith.constant 0 : index
    %185 = vector.load %arg8[%c5_112, %c0_113, %c0_114] : memref<9x6x1xf32, #tpu.memory_space<vmem>>, vector<1x6x1xf32>
    %186 = vector.shape_cast %185 : vector<1x6x1xf32> to vector<6x1xf32>
    %187 = vector.broadcast %186 : vector<6x1xf32> to vector<6x256xf32>
    %188 = arith.mulf %187, %153 : vector<6x256xf32>
    %189 = arith.addf %184, %188 : vector<6x256xf32>
    %c6_115 = arith.constant 6 : index
    %c0_116 = arith.constant 0 : index
    %c0_117 = arith.constant 0 : index
    %190 = vector.load %arg8[%c6_115, %c0_116, %c0_117] : memref<9x6x1xf32, #tpu.memory_space<vmem>>, vector<1x6x1xf32>
    %191 = vector.shape_cast %190 : vector<1x6x1xf32> to vector<6x1xf32>
    %192 = vector.broadcast %191 : vector<6x1xf32> to vector<6x256xf32>
    %193 = arith.mulf %192, %156 : vector<6x256xf32>
    %194 = arith.addf %189, %193 : vector<6x256xf32>
    %c7_118 = arith.constant 7 : index
    %c0_119 = arith.constant 0 : index
    %c0_120 = arith.constant 0 : index
    %195 = vector.load %arg8[%c7_118, %c0_119, %c0_120] : memref<9x6x1xf32, #tpu.memory_space<vmem>>, vector<1x6x1xf32>
    %196 = vector.shape_cast %195 : vector<1x6x1xf32> to vector<6x1xf32>
    %197 = vector.broadcast %196 : vector<6x1xf32> to vector<6x256xf32>
    %198 = arith.mulf %197, %157 : vector<6x256xf32>
    %199 = arith.addf %194, %198 : vector<6x256xf32>
    %c8_121 = arith.constant 8 : index
    %c0_122 = arith.constant 0 : index
    %c0_123 = arith.constant 0 : index
    %200 = vector.load %arg8[%c8_121, %c0_122, %c0_123] : memref<9x6x1xf32, #tpu.memory_space<vmem>>, vector<1x6x1xf32>
    %201 = vector.shape_cast %200 : vector<1x6x1xf32> to vector<6x1xf32>
    %202 = vector.broadcast %201 : vector<6x1xf32> to vector<6x256xf32>
    %203 = arith.mulf %202, %160 : vector<6x256xf32>
    %204 = arith.addf %199, %203 : vector<6x256xf32>
    %c0_124 = arith.constant 0 : index
    %c0_125 = arith.constant 0 : index
    %205 = vector.load %arg9[%c0_124, %c0_125] : memref<6x1xf32, #tpu.memory_space<vmem>>, vector<6x1xf32>
    %206 = vector.broadcast %205 : vector<6x1xf32> to vector<6x256xf32>
    %207 = arith.addf %204, %206 : vector<6x256xf32>
    %cst_126 = arith.constant 0.000000e+00 : f32
    %208 = vector.broadcast %cst_126 : f32 to vector<6x256xf32>
    %209 = arith.maximumf %207, %208 : vector<6x256xf32>
    %c2_127 = arith.constant 2 : index
    %c17_128 = arith.constant 17 : index
    %210 = vector.load %arg15[%c2_127, %c17_128] : memref<32x290xf32, #tpu.memory_space<vmem>>, vector<6x256xf32>
    tpu.vector_store %arg15[%c2_127, %c17_128], %209 {strides = array<i32>} : memref<32x290xf32, #tpu.memory_space<vmem>>, vector<6x256xf32>,
    %c0_129 = arith.constant 0 : index
    %c17_130 = arith.constant 17 : index
    %211 = vector.load %arg15[%c0_129, %c17_130] : memref<32x290xf32, #tpu.memory_space<vmem>>, vector<8x256xf32>
    %212 = arith.truncf %211 : vector<8x256xf32> to vector<8x256xbf16>
    %c0_131 = arith.constant 0 : index
    %c0_132 = arith.constant 0 : index
    %213 = vector.load %arg10[%c0_131, %c0_132] : memref<32x8xbf16, #tpu.memory_space<vmem>>, vector<32x8xbf16>
    %cst_133 = arith.constant dense<0.000000e+00> : vector<32x256xf32>
    %214 = tpu.matmul %213, %212, %cst_133 {dimension_numbers = #tpu.dot_dimension_numbers<[1], [0], [0], [1], [0, 0, 1, 1], [], []>} : vector<32x8xbf16>, vector<8x256xbf16>, vector<32x256xf32> -> vector<32x256xf32>
    %c0_134 = arith.constant 0 : index
    %c0_135 = arith.constant 0 : index
    %215 = vector.load %arg11[%c0_134, %c0_135] : memref<32x1xf32, #tpu.memory_space<vmem>>, vector<32x1xf32>
    %216 = vector.broadcast %215 : vector<32x1xf32> to vector<32x256xf32>
    %217 = arith.addf %214, %216 : vector<32x256xf32>
    %c0_136 = arith.constant 0 : index
    %c17_137 = arith.constant 17 : index
    %218 = vector.load %arg15[%c0_136, %c17_137] : memref<32x290xf32, #tpu.memory_space<vmem>>, vector<32x256xf32>
    tpu.vector_store %arg15[%c0_136, %c17_137], %217 {strides = array<i32>} : memref<32x290xf32, #tpu.memory_space<vmem>>, vector<32x256xf32>,
    %c8_138 = arith.constant 8 : index
    %c0_139 = arith.constant 0 : index
    %219 = vector.load %arg15[%c8_138, %c0_139] : memref<32x290xf32, #tpu.memory_space<vmem>>, vector<24x256xf32>
    %220 = vector.broadcast %23 : vector<1x256xf32> to vector<24x256xf32>
    %221 = arith.mulf %219, %220 : vector<24x256xf32>
    %c8_140 = arith.constant 8 : index
    %c1_141 = arith.constant 1 : index
    %222 = vector.load %arg15[%c8_140, %c1_141] : memref<32x290xf32, #tpu.memory_space<vmem>>, vector<24x256xf32>
    %c8_142 = arith.constant 8 : index
    %c2_143 = arith.constant 2 : index
    %223 = vector.load %arg15[%c8_142, %c2_143] : memref<32x290xf32, #tpu.memory_space<vmem>>, vector<24x256xf32>
    %224 = vector.broadcast %27 : vector<1x256xf32> to vector<24x256xf32>
    %225 = arith.mulf %223, %224 : vector<24x256xf32>
    %c8_144 = arith.constant 8 : index
    %c16_145 = arith.constant 16 : index
    %226 = vector.load %arg15[%c8_144, %c16_145] : memref<32x290xf32, #tpu.memory_space<vmem>>, vector<24x256xf32>
    %227 = vector.broadcast %23 : vector<1x256xf32> to vector<24x256xf32>
    %228 = arith.mulf %226, %227 : vector<24x256xf32>
    %c8_146 = arith.constant 8 : index
    %c17_147 = arith.constant 17 : index
    %229 = vector.load %arg15[%c8_146, %c17_147] : memref<32x290xf32, #tpu.memory_space<vmem>>, vector<24x256xf32>
    %c8_148 = arith.constant 8 : index
    %c18_149 = arith.constant 18 : index
    %230 = vector.load %arg15[%c8_148, %c18_149] : memref<32x290xf32, #tpu.memory_space<vmem>>, vector<24x256xf32>
    %231 = vector.broadcast %27 : vector<1x256xf32> to vector<24x256xf32>
    %232 = arith.mulf %230, %231 : vector<24x256xf32>
    %c8_150 = arith.constant 8 : index
    %c32_151 = arith.constant 32 : index
    %233 = vector.load %arg15[%c8_150, %c32_151] : memref<32x290xf32, #tpu.memory_space<vmem>>, vector<24x256xf32>
    %234 = vector.broadcast %23 : vector<1x256xf32> to vector<24x256xf32>
    %235 = arith.mulf %233, %234 : vector<24x256xf32>
    %c8_152 = arith.constant 8 : index
    %c33_153 = arith.constant 33 : index
    %236 = vector.load %arg15[%c8_152, %c33_153] : memref<32x290xf32, #tpu.memory_space<vmem>>, vector<24x256xf32>
    %c8_154 = arith.constant 8 : index
    %c34_155 = arith.constant 34 : index
    %237 = vector.load %arg15[%c8_154, %c34_155] : memref<32x290xf32, #tpu.memory_space<vmem>>, vector<24x256xf32>
    %238 = vector.broadcast %27 : vector<1x256xf32> to vector<24x256xf32>
    %239 = arith.mulf %237, %238 : vector<24x256xf32>
    %c0_156 = arith.constant 0 : index
    %c0_157 = arith.constant 0 : index
    %c0_158 = arith.constant 0 : index
    %240 = vector.load %arg12[%c0_156, %c0_157, %c0_158] : memref<9x24x1xf32, #tpu.memory_space<vmem>>, vector<1x24x1xf32>
    %241 = vector.shape_cast %240 : vector<1x24x1xf32> to vector<24x1xf32>
    %242 = vector.broadcast %241 : vector<24x1xf32> to vector<24x256xf32>
    %243 = arith.mulf %242, %221 : vector<24x256xf32>
    %c1_159 = arith.constant 1 : index
    %c0_160 = arith.constant 0 : index
    %c0_161 = arith.constant 0 : index
    %244 = vector.load %arg12[%c1_159, %c0_160, %c0_161] : memref<9x24x1xf32, #tpu.memory_space<vmem>>, vector<1x24x1xf32>
    %245 = vector.shape_cast %244 : vector<1x24x1xf32> to vector<24x1xf32>
    %246 = vector.broadcast %245 : vector<24x1xf32> to vector<24x256xf32>
    %247 = arith.mulf %246, %222 : vector<24x256xf32>
    %248 = arith.addf %243, %247 : vector<24x256xf32>
    %c2_162 = arith.constant 2 : index
    %c0_163 = arith.constant 0 : index
    %c0_164 = arith.constant 0 : index
    %249 = vector.load %arg12[%c2_162, %c0_163, %c0_164] : memref<9x24x1xf32, #tpu.memory_space<vmem>>, vector<1x24x1xf32>
    %250 = vector.shape_cast %249 : vector<1x24x1xf32> to vector<24x1xf32>
    %251 = vector.broadcast %250 : vector<24x1xf32> to vector<24x256xf32>
    %252 = arith.mulf %251, %225 : vector<24x256xf32>
    %253 = arith.addf %248, %252 : vector<24x256xf32>
    %c3_165 = arith.constant 3 : index
    %c0_166 = arith.constant 0 : index
    %c0_167 = arith.constant 0 : index
    %254 = vector.load %arg12[%c3_165, %c0_166, %c0_167] : memref<9x24x1xf32, #tpu.memory_space<vmem>>, vector<1x24x1xf32>
    %255 = vector.shape_cast %254 : vector<1x24x1xf32> to vector<24x1xf32>
    %256 = vector.broadcast %255 : vector<24x1xf32> to vector<24x256xf32>
    %257 = arith.mulf %256, %228 : vector<24x256xf32>
    %258 = arith.addf %253, %257 : vector<24x256xf32>
    %c4_168 = arith.constant 4 : index
    %c0_169 = arith.constant 0 : index
    %c0_170 = arith.constant 0 : index
    %259 = vector.load %arg12[%c4_168, %c0_169, %c0_170] : memref<9x24x1xf32, #tpu.memory_space<vmem>>, vector<1x24x1xf32>
    %260 = vector.shape_cast %259 : vector<1x24x1xf32> to vector<24x1xf32>
    %261 = vector.broadcast %260 : vector<24x1xf32> to vector<24x256xf32>
    %262 = arith.mulf %261, %229 : vector<24x256xf32>
    %263 = arith.addf %258, %262 : vector<24x256xf32>
    %c5_171 = arith.constant 5 : index
    %c0_172 = arith.constant 0 : index
    %c0_173 = arith.constant 0 : index
    %264 = vector.load %arg12[%c5_171, %c0_172, %c0_173] : memref<9x24x1xf32, #tpu.memory_space<vmem>>, vector<1x24x1xf32>
    %265 = vector.shape_cast %264 : vector<1x24x1xf32> to vector<24x1xf32>
    %266 = vector.broadcast %265 : vector<24x1xf32> to vector<24x256xf32>
    %267 = arith.mulf %266, %232 : vector<24x256xf32>
    %268 = arith.addf %263, %267 : vector<24x256xf32>
    %c6_174 = arith.constant 6 : index
    %c0_175 = arith.constant 0 : index
    %c0_176 = arith.constant 0 : index
    %269 = vector.load %arg12[%c6_174, %c0_175, %c0_176] : memref<9x24x1xf32, #tpu.memory_space<vmem>>, vector<1x24x1xf32>
    %270 = vector.shape_cast %269 : vector<1x24x1xf32> to vector<24x1xf32>
    %271 = vector.broadcast %270 : vector<24x1xf32> to vector<24x256xf32>
    %272 = arith.mulf %271, %235 : vector<24x256xf32>
    %273 = arith.addf %268, %272 : vector<24x256xf32>
    %c7_177 = arith.constant 7 : index
    %c0_178 = arith.constant 0 : index
    %c0_179 = arith.constant 0 : index
    %274 = vector.load %arg12[%c7_177, %c0_178, %c0_179] : memref<9x24x1xf32, #tpu.memory_space<vmem>>, vector<1x24x1xf32>
    %275 = vector.shape_cast %274 : vector<1x24x1xf32> to vector<24x1xf32>
    %276 = vector.broadcast %275 : vector<24x1xf32> to vector<24x256xf32>
    %277 = arith.mulf %276, %236 : vector<24x256xf32>
    %278 = arith.addf %273, %277 : vector<24x256xf32>
    %c8_180 = arith.constant 8 : index
    %c0_181 = arith.constant 0 : index
    %c0_182 = arith.constant 0 : index
    %279 = vector.load %arg12[%c8_180, %c0_181, %c0_182] : memref<9x24x1xf32, #tpu.memory_space<vmem>>, vector<1x24x1xf32>
    %280 = vector.shape_cast %279 : vector<1x24x1xf32> to vector<24x1xf32>
    %281 = vector.broadcast %280 : vector<24x1xf32> to vector<24x256xf32>
    %282 = arith.mulf %281, %239 : vector<24x256xf32>
    %283 = arith.addf %278, %282 : vector<24x256xf32>
    %c0_183 = arith.constant 0 : index
    %c0_184 = arith.constant 0 : index
    %284 = vector.load %arg13[%c0_183, %c0_184] : memref<24x1xf32, #tpu.memory_space<vmem>>, vector<24x1xf32>
    %285 = vector.broadcast %284 : vector<24x1xf32> to vector<24x256xf32>
    %286 = arith.addf %283, %285 : vector<24x256xf32>
    %287 = arith.extf %29 : vector<32x256xbf16> to vector<32x256xf32>
    %288 = vector.extract_strided_slice %217 {offsets = [0, 0], sizes = [8, 256], strides = [1, 1]} : vector<32x256xf32> to vector<8x256xf32>
    %289 = vector.extract_strided_slice %287 {offsets = [0, 0], sizes = [8, 256], strides = [1, 1]} : vector<32x256xf32> to vector<8x256xf32>
    %290 = arith.addf %288, %289 : vector<8x256xf32>
    %cst_185 = arith.constant 0.000000e+00 : f32
    %291 = vector.broadcast %cst_185 : f32 to vector<8x256xf32>
    %292 = arith.maximumf %290, %291 : vector<8x256xf32>
    %c0_186 = arith.constant 0 : index
    %c0_187 = arith.constant 0 : index
    %c0_188 = arith.constant 0 : index
    %293 = vector.load %arg14[%c0_186, %c0_187, %c0_188] : memref<1x32x256xf32, #tpu.memory_space<vmem>>, vector<1x8x256xf32>
    %294 = vector.shape_cast %293 : vector<1x8x256xf32> to vector<8x256xf32>
    %295 = vector.shape_cast %292 : vector<8x256xf32> to vector<1x8x256xf32>
    tpu.vector_store %arg14[%c0_186, %c0_187, %c0_188], %295 {strides = array<i32>} : memref<1x32x256xf32, #tpu.memory_space<vmem>>, vector<1x8x256xf32>,
    %296 = vector.extract_strided_slice %287 {offsets = [8, 0], sizes = [24, 256], strides = [1, 1]} : vector<32x256xf32> to vector<24x256xf32>
    %297 = arith.addf %286, %296 : vector<24x256xf32>
    %cst_189 = arith.constant 0.000000e+00 : f32
    %298 = vector.broadcast %cst_189 : f32 to vector<24x256xf32>
    %299 = arith.maximumf %297, %298 : vector<24x256xf32>
    %c0_190 = arith.constant 0 : index
    %c8_191 = arith.constant 8 : index
    %c0_192 = arith.constant 0 : index
    %300 = vector.load %arg14[%c0_190, %c8_191, %c0_192] : memref<1x32x256xf32, #tpu.memory_space<vmem>>, vector<1x24x256xf32>
    %301 = vector.shape_cast %300 : vector<1x24x256xf32> to vector<24x256xf32>
    %302 = vector.shape_cast %299 : vector<24x256xf32> to vector<1x24x256xf32>
    tpu.vector_store %arg14[%c0_190, %c8_191, %c0_192], %302 {strides = array<i32>} : memref<1x32x256xf32, #tpu.memory_space<vmem>>, vector<1x24x256xf32>,
    return
  }
  func.func @transform_0(%arg0: i32) -> (i32, i32, i32) {
    %c0_i32 = arith.constant 0 : i32
    %c0_i32_0 = arith.constant 0 : i32
    %c0_i32_1 = arith.constant 0 : i32
    return %arg0, %c0_i32, %c0_i32_0 : i32, i32, i32
  }
  func.func @transform_1(%arg0: i32) -> (i32, i32) {
    %c0_i32 = arith.constant 0 : i32
    %c0_i32_0 = arith.constant 0 : i32
    %c0_i32_1 = arith.constant 0 : i32
    return %c0_i32, %c0_i32_0 : i32, i32
  }
  func.func @transform_2(%arg0: i32) -> (i32, i32) {
    %c0_i32 = arith.constant 0 : i32
    %c0_i32_0 = arith.constant 0 : i32
    %c0_i32_1 = arith.constant 0 : i32
    return %c0_i32, %c0_i32_0 : i32, i32
  }
  func.func @transform_3(%arg0: i32) -> (i32, i32, i32) {
    %c0_i32 = arith.constant 0 : i32
    %c0_i32_0 = arith.constant 0 : i32
    %c0_i32_1 = arith.constant 0 : i32
    %c0_i32_2 = arith.constant 0 : i32
    return %c0_i32, %c0_i32_0, %c0_i32_1 : i32, i32, i32
  }
  func.func @transform_4(%arg0: i32) -> (i32, i32) {
    %c0_i32 = arith.constant 0 : i32
    %c0_i32_0 = arith.constant 0 : i32
    %c0_i32_1 = arith.constant 0 : i32
    return %c0_i32, %c0_i32_0 : i32, i32
  }
  func.func @transform_5(%arg0: i32) -> (i32, i32) {
    %c0_i32 = arith.constant 0 : i32
    %c0_i32_0 = arith.constant 0 : i32
    %c0_i32_1 = arith.constant 0 : i32
    return %c0_i32, %c0_i32_0 : i32, i32
  }
  func.func @transform_6(%arg0: i32) -> (i32, i32) {
    %c0_i32 = arith.constant 0 : i32
    %c0_i32_0 = arith.constant 0 : i32
    %c0_i32_1 = arith.constant 0 : i32
    return %c0_i32, %c0_i32_0 : i32, i32
  }
  func.func @transform_7(%arg0: i32) -> (i32, i32, i32) {
    %c0_i32 = arith.constant 0 : i32
    %c0_i32_0 = arith.constant 0 : i32
    %c0_i32_1 = arith.constant 0 : i32
    %c0_i32_2 = arith.constant 0 : i32
    return %c0_i32, %c0_i32_0, %c0_i32_1 : i32, i32, i32
  }
  func.func @transform_8(%arg0: i32) -> (i32, i32) {
    %c0_i32 = arith.constant 0 : i32
    %c0_i32_0 = arith.constant 0 : i32
    %c0_i32_1 = arith.constant 0 : i32
    return %c0_i32, %c0_i32_0 : i32, i32
  }
  func.func @transform_9(%arg0: i32) -> (i32, i32) {
    %c0_i32 = arith.constant 0 : i32
    %c0_i32_0 = arith.constant 0 : i32
    %c0_i32_1 = arith.constant 0 : i32
    return %c0_i32, %c0_i32_0 : i32, i32
  }
  func.func @transform_10(%arg0: i32) -> (i32, i32) {
    %c0_i32 = arith.constant 0 : i32
    %c0_i32_0 = arith.constant 0 : i32
    %c0_i32_1 = arith.constant 0 : i32
    return %c0_i32, %c0_i32_0 : i32, i32
  }
  func.func @transform_11(%arg0: i32) -> (i32, i32, i32) {
    %c0_i32 = arith.constant 0 : i32
    %c0_i32_0 = arith.constant 0 : i32
    %c0_i32_1 = arith.constant 0 : i32
    %c0_i32_2 = arith.constant 0 : i32
    return %c0_i32, %c0_i32_0, %c0_i32_1 : i32, i32, i32
  }
  func.func @transform_12(%arg0: i32) -> (i32, i32) {
    %c0_i32 = arith.constant 0 : i32
    %c0_i32_0 = arith.constant 0 : i32
    %c0_i32_1 = arith.constant 0 : i32
    return %c0_i32, %c0_i32_0 : i32, i32
  }
  func.func @transform_13(%arg0: i32) -> (i32, i32, i32) {
    %c0_i32 = arith.constant 0 : i32
    %c0_i32_0 = arith.constant 0 : i32
    %c0_i32_1 = arith.constant 0 : i32
    return %arg0, %c0_i32, %c0_i32_0 : i32, i32, i32
  }
}

</mosaic_0001>

<llo_original>
// kernel: tpu_custom_call.1
$region0: #{tpu_custom_call.1}
  #allocation0 [shape = 'u32[]', space=smem, size = 0x4, offset = 0x4, fixed_abs, tag = 'smem constant byte address 0x4 - core index']
  #allocation1 [shape = 'u32[144,128]{1,0:T(1,128)}', space=vmem, size = 0x12000, scoped, tag = 'internal scratch']
  #allocation2 [shape = 'f32[32,290]{1,0:T(8,128)}', space=vmem, size = 0xc000, scoped, tag = 'scratch operand']
  %s0 = inlined_call_operand.vmem [shape: bf16[2,32,256], index: 0, kind: input, shape index: {}]
  %s1 = inlined_call_operand.vmem [shape: bf16[8,32], index: 1, kind: input, shape index: {}]
  %s2 = inlined_call_operand.vmem [shape: f32[8,1], index: 2, kind: input, shape index: {}]
  %s3 = inlined_call_operand.vmem [shape: f32[9,6,1], index: 3, kind: input, shape index: {}]
  %s4 = inlined_call_operand.vmem [shape: f32[6,1], index: 4, kind: input, shape index: {}]
  %s5 = inlined_call_operand.vmem [shape: bf16[8,72], index: 5, kind: input, shape index: {}]
  %s6 = inlined_call_operand.vmem [shape: f32[8,1], index: 6, kind: input, shape index: {}]
  %s7 = inlined_call_operand.vmem [shape: f32[9,6,1], index: 7, kind: input, shape index: {}]
  %s8 = inlined_call_operand.vmem [shape: f32[6,1], index: 8, kind: input, shape index: {}]
  %s9 = inlined_call_operand.vmem [shape: bf16[32,8], index: 9, kind: input, shape index: {}]
  %s10 = inlined_call_operand.vmem [shape: f32[32,1], index: 10, kind: input, shape index: {}]
  %s11 = inlined_call_operand.vmem [shape: f32[9,24,1], index: 11, kind: input, shape index: {}]
  %s12 = inlined_call_operand.vmem [shape: f32[24,1], index: 12, kind: input, shape index: {}]
  %s13 = inlined_call_operand.hbm [shape: f32[2,32,256], index: 13, kind: output, shape index: {}]
  %s14 = sld [smem:[#allocation0]]
  $region85: #{tpu_custom_call.1} parent=0
    _
  %s16 = ssub.s32 1, %s14
  %s17 = scalar_select 0, %s16, %s14
  $region1: #{tpu_custom_call.1} parent=0
    #allocation3 [shape = 'u8[65536]{0}', space=vmem, size = 0x10000, scoped, tag = 'output window, operand 0']
    #allocation4 [shape = 's32[2]{0}', space=sflag, size = 0x8, scoped, tag = 'scoped memory for tpu_custom_call.1']
    %18 = vsyncpa [#allocation4], 0
    %s19 = scalar_lea.sflag [#allocation4], 1
    %20 = vsyncpa %s19, 0
    loop: start=0, step=1, limit=4
    $region2: #{tpu_custom_call.1} parent=1 // loop_pre_header
      _
    $region3: #{tpu_custom_call.1} parent=1 // loop_header
      %s22 = sphi 0, %s26
      %p23 = scmp.ge.s32.totalorder %s22, 4
      %s32 = sphi 0, %s34
      %s35 = sphi 0, %s32
      %s36 = sphi 0, %s35
      %s52 = sphi 0, %s36
      %s56 = sphi 0, %s56
      %s58 = sphi 0, %s56
      %s59 = sphi 0, %s58
      %s73 = sphi 0, %s59
      %s77 = sphi 0, %s77
      %s79 = sphi 0, %s77
      %s80 = sphi 0, %s79
      %s94 = sphi 0, %s80
      %s98 = sphi 0, %s98
      %s100 = sphi 0, %s98
      %s101 = sphi 0, %s100
      %s115 = sphi 0, %s101
      %s119 = sphi 0, %s119
      %s121 = sphi 0, %s119
      %s122 = sphi 0, %s121
      %s136 = sphi 0, %s122
      %s140 = sphi 0, %s140
      %s142 = sphi 0, %s140
      %s143 = sphi 0, %s142
      %s157 = sphi 0, %s143
      %s161 = sphi 0, %s161
      %s163 = sphi 0, %s161
      %s164 = sphi 0, %s163
      %s178 = sphi 0, %s164
      %s182 = sphi 0, %s182
      %s184 = sphi 0, %s182
      %s185 = sphi 0, %s184
      %s199 = sphi 0, %s185
      %s203 = sphi 0, %s203
      %s205 = sphi 0, %s203
      %s206 = sphi 0, %s205
      %s220 = sphi 0, %s206
      %s224 = sphi 0, %s224
      %s226 = sphi 0, %s224
      %s227 = sphi 0, %s226
      %s241 = sphi 0, %s227
      %s245 = sphi 0, %s245
      %s247 = sphi 0, %s245
      %s248 = sphi 0, %s247
      %s262 = sphi 0, %s248
      %s266 = sphi 0, %s266
      %s268 = sphi 0, %s266
      %s269 = sphi 0, %s268
      %s283 = sphi 0, %s269
      %s287 = sphi 0, %s287
      %s289 = sphi 0, %s287
      %s290 = sphi 0, %s289
      %s304 = sphi 0, %s290
      %s310 = sphi 0, %s312
      %s313 = sphi 0, %s310
      %s314 = sphi 0, %s313
      %s330 = sphi 0, %s314
    $region4: #{tpu_custom_call.1} parent=1 // loop_header_branch
      %25 = sbr.rel (%p23) target = $region8
    $region5: #{tpu_custom_call.1} parent=1 // loop_body
      %s27 = ssub.s32 %s22, 1
      %s28 = ssub.s32 %s22, 2
      %s29 = sadd.s32 %s22, 1
      %s30 = ssub.s32 %s22, %s29
      %p31 = scmp.eq.s32.totalorder %s30, 0
      %s33 = sadd.s32 %s32, 1
      %s34 = scalar_select %p31, %s32, %s33
      %p37 = pneg %p31
      %p38 = scmp.eq.s32.totalorder %s22, 1
      %p39 = por %p37, %p38
      %p40 = scmp.ne.s32.totalorder %s32, %s35
      %p41 = scmp.eq.s32.totalorder %s22, 0
      %p42 = por %p40, %p41
      %p43 = scmp.ne.s32.totalorder %s32, %s35
      %p44 = scmp.eq.s32.totalorder %s27, 1
      %p45 = por %p43, %p44
      %p46 = scmp.ne.s32.totalorder %s35, %s36
      %p47 = scmp.eq.s32.totalorder %s27, 0
      %p48 = por %p46, %p47
      %p49 = scmp.ne.s32.totalorder %s35, %s36
      %p50 = scmp.eq.s32.totalorder %s28, 1
      %p51 = por %p49, %p50
      %p53 = scmp.ne.s32.totalorder %s36, %s52
      %p54 = scmp.eq.s32.totalorder %s28, 0
      %p55 = por %p53, %p54
      %s57 = sadd.s32 %s56, 1
      %p60 = scmp.eq.s32.totalorder %s22, 1
      %p61 = scmp.ne.s32.totalorder %s56, %s58
      %p62 = scmp.eq.s32.totalorder %s22, 0
      %p63 = por %p61, %p62
      %p64 = scmp.ne.s32.totalorder %s56, %s58
      %p65 = scmp.eq.s32.totalorder %s27, 1
      %p66 = por %p64, %p65
      %p67 = scmp.ne.s32.totalorder %s58, %s59
      %p68 = scmp.eq.s32.totalorder %s27, 0
      %p69 = por %p67, %p68
      %p70 = scmp.ne.s32.totalorder %s58, %s59
      %p71 = scmp.eq.s32.totalorder %s28, 1
      %p72 = por %p70, %p71
      %p74 = scmp.ne.s32.totalorder %s59, %s73
      %p75 = scmp.eq.s32.totalorder %s28, 0
      %p76 = por %p74, %p75
      %s78 = sadd.s32 %s77, 1
      %p81 = scmp.eq.s32.totalorder %s22, 1
      %p82 = scmp.ne.s32.totalorder %s77, %s79
      %p83 = scmp.eq.s32.totalorder %s22, 0
      %p84 = por %p82, %p83
      %p85 = scmp.ne.s32.totalorder %s77, %s79
      %p86 = scmp.eq.s32.totalorder %s27, 1
      %p87 = por %p85, %p86
      %p88 = scmp.ne.s32.totalorder %s79, %s80
      %p89 = scmp.eq.s32.totalorder %s27, 0
      %p90 = por %p88, %p89
      %p91 = scmp.ne.s32.totalorder %s79, %s80
      %p92 = scmp.eq.s32.totalorder %s28, 1
      %p93 = por %p91, %p92
      %p95 = scmp.ne.s32.totalorder %s80, %s94
      %p96 = scmp.eq.s32.totalorder %s28, 0
      %p97 = por %p95, %p96
      %s99 = sadd.s32 %s98, 1
      %p102 = scmp.eq.s32.totalorder %s22, 1
      %p103 = scmp.ne.s32.totalorder %s98, %s100
      %p104 = scmp.eq.s32.totalorder %s22, 0
      %p105 = por %p103, %p104
      %p106 = scmp.ne.s32.totalorder %s98, %s100
      %p107 = scmp.eq.s32.totalorder %s27, 1
      %p108 = por %p106, %p107
      %p109 = scmp.ne.s32.totalorder %s100, %s101
      %p110 = scmp.eq.s32.totalorder %s27, 0
      %p111 = por %p109, %p110
      %p112 = scmp.ne.s32.totalorder %s100, %s101
      %p113 = scmp.eq.s32.totalorder %s28, 1
      %p114 = por %p112, %p113
      %p116 = scmp.ne.s32.totalorder %s101, %s115
      %p117 = scmp.eq.s32.totalorder %s28, 0
      %p118 = por %p116, %p117
      %s120 = sadd.s32 %s119, 1
      %p123 = scmp.eq.s32.totalorder %s22, 1
      %p124 = scmp.ne.s32.totalorder %s119, %s121
      %p125 = scmp.eq.s32.totalorder %s22, 0
      %p126 = por %p124, %p125
      %p127 = scmp.ne.s32.totalorder %s119, %s121
      %p128 = scmp.eq.s32.totalorder %s27, 1
      %p129 = por %p127, %p128
      %p130 = scmp.ne.s32.totalorder %s121, %s122
      %p131 = scmp.eq.s32.totalorder %s27, 0
      %p132 = por %p130, %p131
      %p133 = scmp.ne.s32.totalorder %s121, %s122
      %p134 = scmp.eq.s32.totalorder %s28, 1
      %p135 = por %p133, %p134
      %p137 = scmp.ne.s32.totalorder %s122, %s136
      %p138 = scmp.eq.s32.totalorder %s28, 0
      %p139 = por %p137, %p138
      %s141 = sadd.s32 %s140, 1
      %p144 = scmp.eq.s32.totalorder %s22, 1
      %p145 = scmp.ne.s32.totalorder %s140, %s142
      %p146 = scmp.eq.s32.totalorder %s22, 0
      %p147 = por %p145, %p146
      %p148 = scmp.ne.s32.totalorder %s140, %s142
      %p149 = scmp.eq.s32.totalorder %s27, 1
      %p150 = por %p148, %p149
      %p151 = scmp.ne.s32.totalorder %s142, %s143
      %p152 = scmp.eq.s32.totalorder %s27, 0
      %p153 = por %p151, %p152
      %p154 = scmp.ne.s32.totalorder %s142, %s143
      %p155 = scmp.eq.s32.totalorder %s28, 1
      %p156 = por %p154, %p155
      %p158 = scmp.ne.s32.totalorder %s143, %s157
      %p159 = scmp.eq.s32.totalorder %s28, 0
      %p160 = por %p158, %p159
      %s162 = sadd.s32 %s161, 1
      %p165 = scmp.eq.s32.totalorder %s22, 1
      %p166 = scmp.ne.s32.totalorder %s161, %s163
      %p167 = scmp.eq.s32.totalorder %s22, 0
      %p168 = por %p166, %p167
      %p169 = scmp.ne.s32.totalorder %s161, %s163
      %p170 = scmp.eq.s32.totalorder %s27, 1
      %p171 = por %p169, %p170
      %p172 = scmp.ne.s32.totalorder %s163, %s164
      %p173 = scmp.eq.s32.totalorder %s27, 0
      %p174 = por %p172, %p173
      %p175 = scmp.ne.s32.totalorder %s163, %s164
      %p176 = scmp.eq.s32.totalorder %s28, 1
      %p177 = por %p175, %p176
      %p179 = scmp.ne.s32.totalorder %s164, %s178
      %p180 = scmp.eq.s32.totalorder %s28, 0
      %p181 = por %p179, %p180
      %s183 = sadd.s32 %s182, 1
      %p186 = scmp.eq.s32.totalorder %s22, 1
      %p187 = scmp.ne.s32.totalorder %s182, %s184
      %p188 = scmp.eq.s32.totalorder %s22, 0
      %p189 = por %p187, %p188
      %p190 = scmp.ne.s32.totalorder %s182, %s184
      %p191 = scmp.eq.s32.totalorder %s27, 1
      %p192 = por %p190, %p191
      %p193 = scmp.ne.s32.totalorder %s184, %s185
      %p194 = scmp.eq.s32.totalorder %s27, 0
      %p195 = por %p193, %p194
      %p196 = scmp.ne.s32.totalorder %s184, %s185
      %p197 = scmp.eq.s32.totalorder %s28, 1
      %p198 = por %p196, %p197
      %p200 = scmp.ne.s32.totalorder %s185, %s199
      %p201 = scmp.eq.s32.totalorder %s28, 0
      %p202 = por %p200, %p201
      %s204 = sadd.s32 %s203, 1
      %p207 = scmp.eq.s32.totalorder %s22, 1
      %p208 = scmp.ne.s32.totalorder %s203, %s205
      %p209 = scmp.eq.s32.totalorder %s22, 0
      %p210 = por %p208, %p209
      %p211 = scmp.ne.s32.totalorder %s203, %s205
      %p212 = scmp.eq.s32.totalorder %s27, 1
      %p213 = por %p211, %p212
      %p214 = scmp.ne.s32.totalorder %s205, %s206
      %p215 = scmp.eq.s32.totalorder %s27, 0
      %p216 = por %p214, %p215
      %p217 = scmp.ne.s32.totalorder %s205, %s206
      %p218 = scmp.eq.s32.totalorder %s28, 1
      %p219 = por %p217, %p218
      %p221 = scmp.ne.s32.totalorder %s206, %s220
      %p222 = scmp.eq.s32.totalorder %s28, 0
      %p223 = por %p221, %p222
      %s225 = sadd.s32 %s224, 1
      %p228 = scmp.eq.s32.totalorder %s22, 1
      %p229 = scmp.ne.s32.totalorder %s224, %s226
      %p230 = scmp.eq.s32.totalorder %s22, 0
      %p231 = por %p229, %p230
      %p232 = scmp.ne.s32.totalorder %s224, %s226
      %p233 = scmp.eq.s32.totalorder %s27, 1
      %p234 = por %p232, %p233
      %p235 = scmp.ne.s32.totalorder %s226, %s227
      %p236 = scmp.eq.s32.totalorder %s27, 0
      %p237 = por %p235, %p236
      %p238 = scmp.ne.s32.totalorder %s226, %s227
      %p239 = scmp.eq.s32.totalorder %s28, 1
      %p240 = por %p238, %p239
      %p242 = scmp.ne.s32.totalorder %s227, %s241
      %p243 = scmp.eq.s32.totalorder %s28, 0
      %p244 = por %p242, %p243
      %s246 = sadd.s32 %s245, 1
      %p249 = scmp.eq.s32.totalorder %s22, 1
      %p250 = scmp.ne.s32.totalorder %s245, %s247
      %p251 = scmp.eq.s32.totalorder %s22, 0
      %p252 = por %p250, %p251
      %p253 = scmp.ne.s32.totalorder %s245, %s247
      %p254 = scmp.eq.s32.totalorder %s27, 1
      %p255 = por %p253, %p254
      %p256 = scmp.ne.s32.totalorder %s247, %s248
      %p257 = scmp.eq.s32.totalorder %s27, 0
      %p258 = por %p256, %p257
      %p259 = scmp.ne.s32.totalorder %s247, %s248
      %p260 = scmp.eq.s32.totalorder %s28, 1
      %p261 = por %p259, %p260
      %p263 = scmp.ne.s32.totalorder %s248, %s262
      %p264 = scmp.eq.s32.totalorder %s28, 0
      %p265 = por %p263, %p264
      %s267 = sadd.s32 %s266, 1
      %p270 = scmp.eq.s32.totalorder %s22, 1
      %p271 = scmp.ne.s32.totalorder %s266, %s268
      %p272 = scmp.eq.s32.totalorder %s22, 0
      %p273 = por %p271, %p272
      %p274 = scmp.ne.s32.totalorder %s266, %s268
      %p275 = scmp.eq.s32.totalorder %s27, 1
      %p276 = por %p274, %p275
      %p277 = scmp.ne.s32.totalorder %s268, %s269
      %p278 = scmp.eq.s32.totalorder %s27, 0
      %p279 = por %p277, %p278
      %p280 = scmp.ne.s32.totalorder %s268, %s269
      %p281 = scmp.eq.s32.totalorder %s28, 1
      %p282 = por %p280, %p281
      %p284 = scmp.ne.s32.totalorder %s269, %s283
      %p285 = scmp.eq.s32.totalorder %s28, 0
      %p286 = por %p284, %p285
      %s288 = sadd.s32 %s287, 1
      %p291 = scmp.eq.s32.totalorder %s22, 1
      %p292 = scmp.ne.s32.totalorder %s287, %s289
      %p293 = scmp.eq.s32.totalorder %s22, 0
      %p294 = por %p292, %p293
      %p295 = scmp.ne.s32.totalorder %s287, %s289
      %p296 = scmp.eq.s32.totalorder %s27, 1
      %p297 = por %p295, %p296
      %p298 = scmp.ne.s32.totalorder %s289, %s290
      %p299 = scmp.eq.s32.totalorder %s27, 0
      %p300 = por %p298, %p299
      %p301 = scmp.ne.s32.totalorder %s289, %s290
      %p302 = scmp.eq.s32.totalorder %s28, 1
      %p303 = por %p301, %p302
      %p305 = scmp.ne.s32.totalorder %s290, %s304
      %p306 = scmp.eq.s32.totalorder %s28, 0
      %p307 = por %p305, %p306
      %s308 = ssub.s32 %s22, %s29
      %p309 = scmp.eq.s32.totalorder %s308, 0
      %s311 = sadd.s32 %s310, 1
      %s312 = scalar_select %p309, %s310, %s311
      %p315 = pneg %p309
      %p316 = scmp.eq.s32.totalorder %s22, 1
      %p317 = por %p315, %p316
      %p318 = scmp.ne.s32.totalorder %s310, %s313
      %p319 = scmp.eq.s32.totalorder %s22, 0
      %p320 = por %p318, %p319
      %p321 = scmp.ne.s32.totalorder %s310, %s313
      %p322 = scmp.eq.s32.totalorder %s27, 1
      %p323 = por %p321, %p322
      %p324 = scmp.ne.s32.totalorder %s313, %s314
      %p325 = scmp.eq.s32.totalorder %s27, 0
      %p326 = por %p324, %p325
      %p327 = scmp.ne.s32.totalorder %s313, %s314
      %p328 = scmp.eq.s32.totalorder %s28, 1
      %p329 = por %p327, %p328
      %p331 = scmp.ne.s32.totalorder %s314, %s330
      %p332 = scmp.eq.s32.totalorder %s28, 0
      %p333 = por %p331, %p332
      %p334 = scmp.le.s32.totalorder 1, %s22
      %p335 = scmp.lt.s32.totalorder %s22, 3
      %p336 = pnand %p334, %p335
      %p337 = pneg %p336
      // Predicated region
      $region9: #{tpu_custom_call.1} parent=5 // pred_check
        _
      $region10: #{tpu_custom_call.1} parent=5 // pred_check_branch
        %339 = sbr.rel (%p336) target = $region12
      $region11: #{tpu_custom_call.1} parent=5 // pred_region
        %s340 = ssub.s32 %s22, 1
        // Predicated region
        $region13: #{tpu_custom_call.1} parent=11 // pred_check
          %p341 = pneg %p69
        $region14: #{tpu_custom_call.1} parent=11 // pred_check_branch
          %343 = sbr.rel (%p341) target = $region16
        $region15: #{tpu_custom_call.1} parent=11 // pred_region
          _
        $region16: #{tpu_custom_call.1} parent=11 // pred_fallthru
          _
        // Predicated region
        $region17: #{tpu_custom_call.1} parent=11 // pred_check
          %p344 = pneg %p90
        $region18: #{tpu_custom_call.1} parent=11 // pred_check_branch
          %346 = sbr.rel (%p344) target = $region20
        $region19: #{tpu_custom_call.1} parent=11 // pred_region
          _
        $region20: #{tpu_custom_call.1} parent=11 // pred_fallthru
          _
        // Predicated region
        $region21: #{tpu_custom_call.1} parent=11 // pred_check
          %p347 = pneg %p111
        $region22: #{tpu_custom_call.1} parent=11 // pred_check_branch
          %349 = sbr.rel (%p347) target = $region24
        $region23: #{tpu_custom_call.1} parent=11 // pred_region
          _
        $region24: #{tpu_custom_call.1} parent=11 // pred_fallthru
          _
        // Predicated region
        $region25: #{tpu_custom_call.1} parent=11 // pred_check
          %p350 = pneg %p132
        $region26: #{tpu_custom_call.1} parent=11 // pred_check_branch
          %352 = sbr.rel (%p350) target = $region28
        $region27: #{tpu_custom_call.1} parent=11 // pred_region
          _
        $region28: #{tpu_custom_call.1} parent=11 // pred_fallthru
          _
        // Predicated region
        $region29: #{tpu_custom_call.1} parent=11 // pred_check
          %p353 = pneg %p153
        $region30: #{tpu_custom_call.1} parent=11 // pred_check_branch
          %355 = sbr.rel (%p353) target = $region32
        $region31: #{tpu_custom_call.1} parent=11 // pred_region
          _
        $region32: #{tpu_custom_call.1} parent=11 // pred_fallthru
          _
        // Predicated region
        $region33: #{tpu_custom_call.1} parent=11 // pred_check
          %p356 = pneg %p174
        $region34: #{tpu_custom_call.1} parent=11 // pred_check_branch
          %358 = sbr.rel (%p356) target = $region36
        $region35: #{tpu_custom_call.1} parent=11 // pred_region
          _
        $region36: #{tpu_custom_call.1} parent=11 // pred_fallthru
          _
        // Predicated region
        $region37: #{tpu_custom_call.1} parent=11 // pred_check
          %p359 = pneg %p195
        $region38: #{tpu_custom_call.1} parent=11 // pred_check_branch
          %361 = sbr.rel (%p359) target = $region40
        $region39: #{tpu_custom_call.1} parent=11 // pred_region
          _
        $region40: #{tpu_custom_call.1} parent=11 // pred_fallthru
          _
        // Predicated region
        $region41: #{tpu_custom_call.1} parent=11 // pred_check
          %p362 = pneg %p216
        $region42: #{tpu_custom_call.1} parent=11 // pred_check_branch
          %364 = sbr.rel (%p362) target = $region44
        $region43: #{tpu_custom_call.1} parent=11 // pred_region
          _
        $region44: #{tpu_custom_call.1} parent=11 // pred_fallthru
          _
        // Predicated region
        $region45: #{tpu_custom_call.1} parent=11 // pred_check
          %p365 = pneg %p237
        $region46: #{tpu_custom_call.1} parent=11 // pred_check_branch
          %367 = sbr.rel (%p365) target = $region48
        $region47: #{tpu_custom_call.1} parent=11 // pred_region
          _
        $region48: #{tpu_custom_call.1} parent=11 // pred_fallthru
          _
        // Predicated region
        $region49: #{tpu_custom_call.1} parent=11 // pred_check
          %p368 = pneg %p258
        $region50: #{tpu_custom_call.1} parent=11 // pred_check_branch
          %370 = sbr.rel (%p368) target = $region52
        $region51: #{tpu_custom_call.1} parent=11 // pred_region
          _
        $region52: #{tpu_custom_call.1} parent=11 // pred_fallthru
          _
        // Predicated region
        $region53: #{tpu_custom_call.1} parent=11 // pred_check
          %p371 = pneg %p279
        $region54: #{tpu_custom_call.1} parent=11 // pred_check_branch
          %373 = sbr.rel (%p371) target = $region56
        $region55: #{tpu_custom_call.1} parent=11 // pred_region
          _
        $region56: #{tpu_custom_call.1} parent=11 // pred_fallthru
          _
        // Predicated region
        $region57: #{tpu_custom_call.1} parent=11 // pred_check
          %p374 = pneg %p300
        $region58: #{tpu_custom_call.1} parent=11 // pred_check_branch
          %376 = sbr.rel (%p374) target = $region60
        $region59: #{tpu_custom_call.1} parent=11 // pred_region
          _
        $region60: #{tpu_custom_call.1} parent=11 // pred_fallthru
          _
      $region12: #{tpu_custom_call.1} parent=5 // pred_fallthru
        _
      %p377 = scmp.lt.s32.totalorder %s22, 2
      // Predicated region
      $region61: #{tpu_custom_call.1} parent=5 // pred_check
        %p378 = pneg %p377
      $region62: #{tpu_custom_call.1} parent=5 // pred_check_branch
        %380 = sbr.rel (%p378) target = $region64
      $region63: #{tpu_custom_call.1} parent=5 // pred_region
        // Predicated region
        $region65: #{tpu_custom_call.1} parent=63 // pred_check
          %p381 = pneg %p42
        $region66: #{tpu_custom_call.1} parent=63 // pred_check_branch
          %383 = sbr.rel (%p381) target = $region68
        $region67: #{tpu_custom_call.1} parent=63 // pred_region
          %p384 = scmp.lt.s32.totalorder %s22, 1
          %s385 = scalar_select %p384, %s22, 1
          %s386 = smul.addr %s385, 8
          %s387 = smul.addr %s386, 4
          %s388 = scalar_lea.vmem %s0, %s387
        $region68: #{tpu_custom_call.1} parent=63 // pred_fallthru
          _
      $region64: #{tpu_custom_call.1} parent=5 // pred_fallthru
        _
      %p389 = scmp.le.s32.totalorder 1, %s22
      %p390 = scmp.lt.s32.totalorder %s22, 3
      %p391 = pnand %p389, %p390
      %p392 = pneg %p391
      // Predicated region
      $region69: #{tpu_custom_call.1} parent=5 // pred_check
        _
      $region70: #{tpu_custom_call.1} parent=5 // pred_check_branch
        %394 = sbr.rel (%p391) target = $region72
      $region71: #{tpu_custom_call.1} parent=5 // pred_region
        %s395 = ssub.s32 %s22, 1
        %p396 = scmp.lt.s32.totalorder %s27, 1
        %s397 = scalar_select %p396, %s27, 1
        %s398 = smul.addr %s397, 8
        %s399 = smul.addr %s398, 4
        %s400 = scalar_lea.vmem %s0, %s399
        %p401 = pneg %p48
        %p402 = pneg %p45
        %p403 = pneg %p69
        %p404 = pneg %p66
        %p405 = pneg %p90
        %p406 = pneg %p87
        %p407 = pneg %p111
        %p408 = pneg %p108
        %p409 = pneg %p132
        %p410 = pneg %p129
        %p411 = pneg %p153
        %p412 = pneg %p150
        %p413 = pneg %p174
        %p414 = pneg %p171
        %p415 = pneg %p195
        %p416 = pneg %p192
        %p417 = pneg %p216
        %p418 = pneg %p213
        %p419 = pneg %p237
        %p420 = pneg %p234
        %p421 = pneg %p258
        %p422 = pneg %p255
        %p423 = pneg %p279
        %p424 = pneg %p276
        %p425 = pneg %p300
        %p426 = pneg %p297
        %p427 = pneg %p326
        %p428 = pneg %p323
        %s429 = sand.u32 %s313, 1
        %s430 = scalar_lea.sflag [#allocation4], %s429
        %s431 = sand.u32 %s313, 1
        %s432 = smul.addr %s431, 64
        %s433 = scalar_lea.vmem [#allocation3], %s432
        %p434 = scmp.lt.s32.totalorder %s27, 1
        %s435 = scalar_select %p434, %s27, 1
        %s436 = smul.addr %s435, 8
        %s437 = smul.addr %s436, 4
        %s438 = scalar_lea.vmem %s0, %s437
        %vm440 = vcmask 138240
        %441 = vst.msk [vmem:[#allocation2] sm:$0xff] %vm440, 0.0
        %442 = vst.msk [vmem:[#allocation2 + $0x18] sm:$0xff] %vm440, 0.0
        %443 = vst.msk [vmem:[#allocation2 + $0x30] sm:$0xff] %vm440, 0.0
        %444 = vst.msk [vmem:[#allocation2 + $0x48] sm:$0xff] %vm440, 0.0
        %vm445 = vcmask 277640
        %446 = vst.msk [vmem:[#allocation2 + $0x10] sm:$0xff] %vm445, 0.0
        %447 = vst.msk [vmem:[#allocation2 + $0x28] sm:$0xff] %vm445, 0.0
        %448 = vst.msk [vmem:[#allocation2 + $0x40] sm:$0xff] %vm445, 0.0
        %449 = vst.msk [vmem:[#allocation2 + $0x58] sm:$0xff] %vm445, 0.0
        %v450 = vlaneseq
        %v451 = vand.u32 %v450, 127
        %v452 = vadd.s32 %v451, 128
        %vm453 = vcmp.lt.s32.totalorder %v451, 0
        %v454 = vsub.s32 0, %v451
        %v455 = vsel %vm453, %v454, %v451
        %v456 = vshrl.u32 %v455, 4
        %v457 = vand.u32 %v455, 15
        %v458 = vsub.s32 0, %v457
        %v459 = vsel %vm453, %v458, %v457
        %vm460 = vcmp.lt.s32.totalorder %v452, 0
        %v461 = vsub.s32 0, %v452
        %v462 = vsel %vm460, %v461, %v452
        %v463 = vshrl.u32 %v462, 4
        %v464 = vand.u32 %v462, 15
        %v465 = vsub.s32 0, %v464
        %v466 = vsel %vm460, %v465, %v464
        %vm467 = vcmp.ne.s32.totalorder %v459, 0
        %vm468 = vcmp.ne.s32.totalorder %v466, 0
        %vm469 = vcmp.lt.s32.totalorder %v459, 0
        %vm470 = vcmp.lt.s32.totalorder %v466, 0
        %vm471 = vmand %vm469, %vm467
        %vm472 = vmand %vm470, %vm468
        %v473 = vadd.s32 %v459, 16
        %v474 = vadd.s32 %v466, 16
        %v475 = vsel %vm471, %v473, %v459
        %v476 = vsel %vm472, %v474, %v466
        %vm477 = vcmp.gt.s32.totalorder %v475, 0
        %vm478 = vcmp.gt.s32.totalorder %v476, 0
        %v479 = vsel %vm477, 1, 0
        %v480 = vsel %vm478, 1, 0
        %v481 = vcvt.s32.f32 %v479
        %v482 = vcvt.s32.f32 %v480
        %vm483 = vcmp.lt.s32.totalorder %v475, 15
        %vm484 = vcmp.lt.s32.totalorder %v476, 15
        %v485 = vsel %vm483, 1, 0
        %v486 = vsel %vm484, 1, 0
        %v487 = vcvt.s32.f32 %v485
        %v488 = vcvt.s32.f32 %v486
        %v489 = vld [vmem:[%s438] sm:$0xff]
        %v490 = vld [vmem:[%s438 + $0x8] sm:$0xff]
        %v491 = vld [vmem:[%s438 + $0x10] sm:$0xff]
        %v492 = vld [vmem:[%s438 + $0x18] sm:$0xff]
        %v493 = vld [vmem:[%s1] sm:$0xf]
        %v494 = vld [vmem:[%s2] sm:$0xff]
        %496 = vset.pattern.permute.xlu0 0
        %497 = vperm.xlu0 %496, %v494
        %v498 = vpop.permute.xlu0 %497
        %v504 = vunpack.c.l.b16 %v489
        %v505 = vunpack.c.h.b16 %v489
        %v506 = vunpack.c.l.b16 %v490
        %v507 = vunpack.c.h.b16 %v490
        %v508 = vunpack.c.l.b16 %v491
        %v509 = vunpack.c.h.b16 %v491
        %v510 = vunpack.c.l.b16 %v492
        %v511 = vunpack.c.h.b16 %v492
        %v512 = vpack.c.b16 %v506, %v504
        %v513 = vpack.c.b16 %v507, %v505
        %v514 = vpack.c.b16 %v510, %v508
        %v515 = vpack.c.b16 %v511, %v509
        %vm520 = vcmask 261120
        %v522 = vsel %vm520, %v493, 0
        %524 = vmatprep.subr.bf16.mxu0 %v513
        %525 = vmatpush1.bf16.msra.mxu0 %v512
        %526 = vmatprep.subr.bf16.mxu0 %v515
        %527 = vmatpush1.bf16.msra.mxu0 %v514
        %528 = vmatprep.subr.bf16.mxu0 0
        %529 = vmatpush1.bf16.msra.mxu0 0
        %530 = vmatprep.subr.bf16.mxu0 0
        %531 = vmatpush1.bf16.msra.mxu0 0
        %532 = vmatprep.subr.bf16.mxu0 0
        %533 = vmatpush1.bf16.msra.mxu0 0
        %534 = vmatprep.subr.bf16.mxu0 0
        %535 = vmatpush1.bf16.msra.mxu0 0
        %536 = vmatprep.subr.bf16.mxu0 0
        %537 = vmatpush1.bf16.msra.mxu0 0
        %538 = vmatprep.subr.bf16.mxu0 0
        %539 = vmatpush1.bf16.msra.mxu0 0
        %540 = vmatprep.subr.bf16.mxu0 0
        %541 = vmatpush1.bf16.msra.mxu0 0
        %542 = vmatprep.subr.bf16.mxu0 0
        %543 = vmatpush1.bf16.msra.mxu0 0
        %544 = vmatprep.subr.bf16.mxu0 0
        %545 = vmatpush1.bf16.msra.mxu0 0
        %546 = vmatprep.subr.bf16.mxu0 0
        %547 = vmatpush1.bf16.msra.mxu0 0
        %548 = vmatprep.subr.bf16.mxu0 0
        %549 = vmatpush1.bf16.msra.mxu0 0
        %550 = vmatprep.subr.bf16.mxu0 0
        %551 = vmatpush1.bf16.msra.mxu0 0
        %552 = vmatprep.subr.bf16.mxu0 0
        %553 = vmatpush1.bf16.msra.mxu0 0
        %554 = vmatprep.subr.bf16.mxu0 0
        %555 = vmatpush1.bf16.msra.mxu0 0
        %556 = vmatprep.mubr.bf16.mxu0 0
        %557 = vmatmul.mubr.bf16.gmra.mrb[0].mxu0 %v522
        %v558 = vpop.f32.mrb[0].mxu0
        %v559 = vadd.f32 %v498, %v558
        %v560 = vpop.f32.mrb[0].mxu0
        %v561 = vadd.f32 %v498, %v560
        %v562 = vpop.f32.mrb[0].mxu0
        %v563 = vpop.f32.mrb[0].mxu0
        %564 = vdwg.mxu0
        %v565 = vmax.f32 %v559, 0.0
        %v566 = vmax.f32 %v561, 0.0
        %569 = vrot.lane.b32.xlu0 %v565, 17
        %v570 = vpop.permute.xlu0 %569
        %571 = vrot.lane.b32.xlu0 %v566, 17
        %v572 = vpop.permute.xlu0 %571
        %v573 = vsel %vm440, %v570, %v572
        %vm577 = vcmask 1047688
        %578 = vst.msk [vmem:[#allocation2] sm:$0xff] %vm577, %v570
        %579 = vst [vmem:[#allocation2 + $0x8] sm:$0xff] %v573
        %580 = vst.msk [vmem:[#allocation2 + $0x10] sm:$0xff] %vm440, %v572
        %v581 = vld [vmem:[#allocation2] sm:$0xfc]
        %v582 = vld [vmem:[#allocation2 + $0x8] sm:$0xfc]
        %v583 = vmul.f32 %v581, %v481
        %v584 = vmul.f32 %v582, %v482
        %v585 = vld [vmem:[#allocation2 + $0x10] sm:$0xfc]
        %588 = vrot.lane.b32.xlu0 %v487, 2
        %v589 = vpop.permute.xlu0 %588
        %590 = vrot.lane.b32.xlu0 %v488, 2
        %v591 = vpop.permute.xlu0 %590
        %vm592 = vcmask 15360
        %v593 = vsel %vm592, %v589, %v591
        %v597 = vmul.f32 %v581, %v589
        %v598 = vmul.f32 %v582, %v593
        %v599 = vmul.f32 %v585, %v591
        %602 = vrot.lane.b32.xlu0 %v481, 16
        %v603 = vpop.permute.xlu0 %602
        %604 = vrot.lane.b32.xlu0 %v482, 16
        %v605 = vpop.permute.xlu0 %604
        %vm606 = vcmask 130048
        %v607 = vsel %vm606, %v603, %v605
        %v611 = vmul.f32 %v581, %v603
        %v612 = vmul.f32 %v582, %v607
        %v613 = vmul.f32 %v585, %v605
        %614 = vrot.lane.b32.xlu0 %v487, 18
        %v615 = vpop.permute.xlu0 %614
        %616 = vrot.lane.b32.xlu0 %v488, 18
        %v617 = vpop.permute.xlu0 %616
        %vm618 = vcmask 146432
        %v619 = vsel %vm618, %v615, %v617
        %v623 = vmul.f32 %v581, %v615
        %v624 = vmul.f32 %v582, %v619
        %v625 = vmul.f32 %v585, %v617
        %626 = vrot.lane.b32.xlu0 %v481, 32
        %v627 = vpop.permute.xlu0 %626
        %628 = vrot.lane.b32.xlu0 %v482, 32
        %v629 = vpop.permute.xlu0 %628
        %v630 = vsel %vm520, %v627, %v629
        %v634 = vmul.f32 %v581, %v627
        %v635 = vmul.f32 %v582, %v630
        %v636 = vmul.f32 %v585, %v629
        %637 = vrot.lane.b32.xlu0 %v487, 34
        %v638 = vpop.permute.xlu0 %637
        %639 = vrot.lane.b32.xlu0 %v488, 34
        %v640 = vpop.permute.xlu0 %639
        %vm641 = vcmask 277504
        %v642 = vsel %vm641, %v638, %v640
        %v646 = vmul.f32 %v581, %v638
        %v647 = vmul.f32 %v582, %v642
        %v648 = vmul.f32 %v585, %v640
        %v649 = vld [vmem:[%s3] sm:$0x3f]
        %651 = vset.pattern.permute.xlu0 0
        %652 = vperm.xlu0 %651, %v649
        %v653 = vpop.permute.xlu0 %652
        %v657 = vrot.slane %v583, 2
        %v658 = vrot.slane %v584, 2
        %v661 = vmul.f32 %v653, %v657
        %v662 = vmul.f32 %v653, %v658
        %s663 = scalar_lea.vmem %s3, 8
        %v664 = vld [vmem:[%s663] sm:$0x3f]
        %666 = vset.pattern.permute.xlu0 0
        %667 = vperm.xlu0 %666, %v664
        %v668 = vpop.permute.xlu0 %667
        %v673 = vrot.slane %v581, 2
        %v674 = vrot.slane %v582, 2
        %v675 = vrot.slane %v585, 2
        %676 = vrot.lane.b32.xlu0 %v673, 127
        %v677 = vpop.permute.xlu0 %676
        %678 = vrot.lane.b32.xlu0 %v674, 127
        %v679 = vpop.permute.xlu0 %678
        %680 = vrot.lane.b32.xlu0 %v675, 127
        %v681 = vpop.permute.xlu0 %680
        %vm682 = vcmask 1039360
        %v683 = vsel %vm682, %v677, %v679
        %v684 = vsel %vm682, %v679, %v681
        %v687 = vmul.f32 %v668, %v683
        %v688 = vmul.f32 %v668, %v684
        %v689 = vadd.f32 %v661, %v687
        %v690 = vadd.f32 %v662, %v688
        %s691 = scalar_lea.vmem %s3, 16
        %v692 = vld [vmem:[%s691] sm:$0x3f]
        %694 = vset.pattern.permute.xlu0 0
        %695 = vperm.xlu0 %694, %v692
        %v696 = vpop.permute.xlu0 %695
        %v701 = vrot.slane %v597, 2
        %v702 = vrot.slane %v598, 2
        %v703 = vrot.slane %v599, 2
        %704 = vrot.lane.b32.xlu0 %v701, 126
        %v705 = vpop.permute.xlu0 %704
        %706 = vrot.lane.b32.xlu0 %v702, 126
        %v707 = vpop.permute.xlu0 %706
        %708 = vrot.lane.b32.xlu0 %v703, 126
        %v709 = vpop.permute.xlu0 %708
        %vm710 = vcmask 1031168
        %v711 = vsel %vm710, %v705, %v707
        %v712 = vsel %vm710, %v707, %v709
        %v715 = vmul.f32 %v696, %v711
        %v716 = vmul.f32 %v696, %v712
        %v717 = vadd.f32 %v689, %v715
        %v718 = vadd.f32 %v690, %v716
        %s719 = scalar_lea.vmem %s3, 24
        %v720 = vld [vmem:[%s719] sm:$0x3f]
        %722 = vset.pattern.permute.xlu0 0
        %723 = vperm.xlu0 %722, %v720
        %v724 = vpop.permute.xlu0 %723
        %v729 = vrot.slane %v611, 2
        %v730 = vrot.slane %v612, 2
        %v731 = vrot.slane %v613, 2
        %732 = vrot.lane.b32.xlu0 %v729, 112
        %v733 = vpop.permute.xlu0 %732
        %734 = vrot.lane.b32.xlu0 %v730, 112
        %v735 = vpop.permute.xlu0 %734
        %736 = vrot.lane.b32.xlu0 %v731, 112
        %v737 = vpop.permute.xlu0 %736
        %vm738 = vcmask 916480
        %v739 = vsel %vm738, %v733, %v735
        %v740 = vsel %vm738, %v735, %v737
        %v743 = vmul.f32 %v724, %v739
        %v744 = vmul.f32 %v724, %v740
        %v745 = vadd.f32 %v717, %v743
        %v746 = vadd.f32 %v718, %v744
        %s747 = scalar_lea.vmem %s3, 32
        %v748 = vld [vmem:[%s747] sm:$0x3f]
        %750 = vset.pattern.permute.xlu0 0
        %751 = vperm.xlu0 %750, %v748
        %v752 = vpop.permute.xlu0 %751
        %754 = vrot.lane.b32.xlu0 %v673, 111
        %v755 = vpop.permute.xlu0 %754
        %756 = vrot.lane.b32.xlu0 %v674, 111
        %v757 = vpop.permute.xlu0 %756
        %758 = vrot.lane.b32.xlu0 %v675, 111
        %v759 = vpop.permute.xlu0 %758
        %vm760 = vcmask 908288
        %v761 = vsel %vm760, %v755, %v757
        %v762 = vsel %vm760, %v757, %v759
        %v765 = vmul.f32 %v752, %v761
        %v766 = vmul.f32 %v752, %v762
        %v767 = vadd.f32 %v745, %v765
        %v768 = vadd.f32 %v746, %v766
        %s769 = scalar_lea.vmem %s3, 40
        %v770 = vld [vmem:[%s769] sm:$0x3f]
        %772 = vset.pattern.permute.xlu0 0
        %773 = vperm.xlu0 %772, %v770
        %v774 = vpop.permute.xlu0 %773
        %v779 = vrot.slane %v623, 2
        %v780 = vrot.slane %v624, 2
        %v781 = vrot.slane %v625, 2
        %782 = vrot.lane.b32.xlu0 %v779, 110
        %v783 = vpop.permute.xlu0 %782
        %784 = vrot.lane.b32.xlu0 %v780, 110
        %v785 = vpop.permute.xlu0 %784
        %786 = vrot.lane.b32.xlu0 %v781, 110
        %v787 = vpop.permute.xlu0 %786
        %vm788 = vcmask 900096
        %v789 = vsel %vm788, %v783, %v785
        %v790 = vsel %vm788, %v785, %v787
        %v793 = vmul.f32 %v774, %v789
        %v794 = vmul.f32 %v774, %v790
        %v795 = vadd.f32 %v767, %v793
        %v796 = vadd.f32 %v768, %v794
        %s797 = scalar_lea.vmem %s3, 48
        %v798 = vld [vmem:[%s797] sm:$0x3f]
        %800 = vset.pattern.permute.xlu0 0
        %801 = vperm.xlu0 %800, %v798
        %v802 = vpop.permute.xlu0 %801
        %v807 = vrot.slane %v634, 2
        %v808 = vrot.slane %v635, 2
        %v809 = vrot.slane %v636, 2
        %810 = vrot.lane.b32.xlu0 %v807, 96
        %v811 = vpop.permute.xlu0 %810
        %812 = vrot.lane.b32.xlu0 %v808, 96
        %v813 = vpop.permute.xlu0 %812
        %814 = vrot.lane.b32.xlu0 %v809, 96
        %v815 = vpop.permute.xlu0 %814
        %vm816 = vcmask 785408
        %v817 = vsel %vm816, %v811, %v813
        %v818 = vsel %vm816, %v813, %v815
        %v821 = vmul.f32 %v802, %v817
        %v822 = vmul.f32 %v802, %v818
        %v823 = vadd.f32 %v795, %v821
        %v824 = vadd.f32 %v796, %v822
        %s825 = scalar_lea.vmem %s3, 56
        %v826 = vld [vmem:[%s825] sm:$0x3f]
        %828 = vset.pattern.permute.xlu0 0
        %829 = vperm.xlu0 %828, %v826
        %v830 = vpop.permute.xlu0 %829
        %832 = vrot.lane.b32.xlu0 %v673, 95
        %v833 = vpop.permute.xlu0 %832
        %834 = vrot.lane.b32.xlu0 %v674, 95
        %v835 = vpop.permute.xlu0 %834
        %836 = vrot.lane.b32.xlu0 %v675, 95
        %v837 = vpop.permute.xlu0 %836
        %vm838 = vcmask 777216
        %v839 = vsel %vm838, %v833, %v835
        %v840 = vsel %vm838, %v835, %v837
        %v843 = vmul.f32 %v830, %v839
        %v844 = vmul.f32 %v830, %v840
        %v845 = vadd.f32 %v823, %v843
        %v846 = vadd.f32 %v824, %v844
        %s847 = scalar_lea.vmem %s3, 64
        %v848 = vld [vmem:[%s847] sm:$0x3f]
        %850 = vset.pattern.permute.xlu0 0
        %851 = vperm.xlu0 %850, %v848
        %v852 = vpop.permute.xlu0 %851
        %v857 = vrot.slane %v646, 2
        %v858 = vrot.slane %v647, 2
        %v859 = vrot.slane %v648, 2
        %860 = vrot.lane.b32.xlu0 %v857, 94
        %v861 = vpop.permute.xlu0 %860
        %862 = vrot.lane.b32.xlu0 %v858, 94
        %v863 = vpop.permute.xlu0 %862
        %864 = vrot.lane.b32.xlu0 %v859, 94
        %v865 = vpop.permute.xlu0 %864
        %vm866 = vcmask 769024
        %v867 = vsel %vm866, %v861, %v863
        %v868 = vsel %vm866, %v863, %v865
        %v871 = vmul.f32 %v852, %v867
        %v872 = vmul.f32 %v852, %v868
        %v873 = vadd.f32 %v845, %v871
        %v874 = vadd.f32 %v846, %v872
        %v875 = vld [vmem:[%s4] sm:$0x3f]
        %877 = vset.pattern.permute.xlu0 0
        %878 = vperm.xlu0 %877, %v875
        %v879 = vpop.permute.xlu0 %878
        %v881 = vadd.f32 %v873, %v879
        %v882 = vadd.f32 %v874, %v879
        %v883 = vmax.f32 %v881, 0.0
        %v884 = vmax.f32 %v882, 0.0
        %v887 = vrot.slane %v883, 6
        %v888 = vrot.slane %v884, 6
        %889 = vrot.lane.b32.xlu0 %v887, 17
        %v890 = vpop.permute.xlu0 %889
        %891 = vrot.lane.b32.xlu0 %v888, 17
        %v892 = vpop.permute.xlu0 %891
        %v893 = vsel %vm440, %v890, %v892
        %vm897 = vcmask 1047690
        %898 = vst.msk [vmem:[#allocation2] sm:$0xfc] %vm897, %v890
        %899 = vst [vmem:[#allocation2 + $0x8] sm:$0xfc] %v893
        %vm900 = vcmask 138242
        %901 = vst.msk [vmem:[#allocation2 + $0x10] sm:$0xfc] %vm900, %v892
        %v902 = vld [vmem:[#allocation2] sm:$0xff]
        %v903 = vld [vmem:[#allocation2 + $0x8] sm:$0xff]
        %v904 = vmul.f32 %v902, %v481
        %v905 = vmul.f32 %v903, %v482
        %v906 = vld [vmem:[#allocation2 + $0x10] sm:$0xff]
        %v907 = vmul.f32 %v902, %v589
        %v908 = vmul.f32 %v903, %v593
        %v909 = vmul.f32 %v906, %v591
        %v910 = vmul.f32 %v902, %v603
        %v911 = vmul.f32 %v903, %v607
        %v912 = vmul.f32 %v906, %v605
        %v913 = vmul.f32 %v902, %v615
        %v914 = vmul.f32 %v903, %v619
        %v915 = vmul.f32 %v906, %v617
        %v916 = vmul.f32 %v902, %v627
        %v917 = vmul.f32 %v903, %v630
        %v918 = vmul.f32 %v906, %v629
        %v919 = vmul.f32 %v902, %v638
        %v920 = vmul.f32 %v903, %v642
        %v921 = vmul.f32 %v906, %v640
        %925 = vrot.lane.b32.xlu0 %v902, 127
        %v926 = vpop.permute.xlu0 %925
        %927 = vrot.lane.b32.xlu0 %v903, 127
        %v928 = vpop.permute.xlu0 %927
        %929 = vrot.lane.b32.xlu0 %v906, 127
        %v930 = vpop.permute.xlu0 %929
        %v931 = vsel %vm682, %v926, %v928
        %v932 = vsel %vm682, %v928, %v930
        %938 = vrot.lane.b32.xlu0 %v907, 126
        %v939 = vpop.permute.xlu0 %938
        %940 = vrot.lane.b32.xlu0 %v908, 126
        %v941 = vpop.permute.xlu0 %940
        %942 = vrot.lane.b32.xlu0 %v909, 126
        %v943 = vpop.permute.xlu0 %942
        %v944 = vsel %vm710, %v939, %v941
        %v945 = vsel %vm710, %v941, %v943
        %951 = vrot.lane.b32.xlu0 %v910, 112
        %v952 = vpop.permute.xlu0 %951
        %953 = vrot.lane.b32.xlu0 %v911, 112
        %v954 = vpop.permute.xlu0 %953
        %955 = vrot.lane.b32.xlu0 %v912, 112
        %v956 = vpop.permute.xlu0 %955
        %v957 = vsel %vm738, %v952, %v954
        %v958 = vsel %vm738, %v954, %v956
        %961 = vrot.lane.b32.xlu0 %v902, 111
        %v962 = vpop.permute.xlu0 %961
        %963 = vrot.lane.b32.xlu0 %v903, 111
        %v964 = vpop.permute.xlu0 %963
        %965 = vrot.lane.b32.xlu0 %v906, 111
        %v966 = vpop.permute.xlu0 %965
        %v967 = vsel %vm760, %v962, %v964
        %v968 = vsel %vm760, %v964, %v966
        %974 = vrot.lane.b32.xlu0 %v913, 110
        %v975 = vpop.permute.xlu0 %974
        %976 = vrot.lane.b32.xlu0 %v914, 110
        %v977 = vpop.permute.xlu0 %976
        %978 = vrot.lane.b32.xlu0 %v915, 110
        %v979 = vpop.permute.xlu0 %978
        %v980 = vsel %vm788, %v975, %v977
        %v981 = vsel %vm788, %v977, %v979
        %987 = vrot.lane.b32.xlu0 %v916, 96
        %v988 = vpop.permute.xlu0 %987
        %989 = vrot.lane.b32.xlu0 %v917, 96
        %v990 = vpop.permute.xlu0 %989
        %991 = vrot.lane.b32.xlu0 %v918, 96
        %v992 = vpop.permute.xlu0 %991
        %v993 = vsel %vm816, %v988, %v990
        %v994 = vsel %vm816, %v990, %v992
        %997 = vrot.lane.b32.xlu0 %v902, 95
        %v998 = vpop.permute.xlu0 %997
        %999 = vrot.lane.b32.xlu0 %v903, 95
        %v1000 = vpop.permute.xlu0 %999
        %1001 = vrot.lane.b32.xlu0 %v906, 95
        %v1002 = vpop.permute.xlu0 %1001
        %v1003 = vsel %vm838, %v998, %v1000
        %v1004 = vsel %vm838, %v1000, %v1002
        %1010 = vrot.lane.b32.xlu0 %v919, 94
        %v1011 = vpop.permute.xlu0 %1010
        %1012 = vrot.lane.b32.xlu0 %v920, 94
        %v1013 = vpop.permute.xlu0 %1012
        %1014 = vrot.lane.b32.xlu0 %v921, 94
        %v1015 = vpop.permute.xlu0 %1014
        %v1016 = vsel %vm866, %v1011, %v1013
        %v1017 = vsel %vm866, %v1013, %v1015
        %v1020 = vpack.c.bf16 %v931, %v904
        %v1021 = vpack.c.bf16 %v932, %v905
        %v1022 = vpack.c.bf16 %v957, %v944
        %v1023 = vpack.c.bf16 %v958, %v945
        %v1024 = vpack.c.bf16 %v980, %v967
        %v1025 = vpack.c.bf16 %v981, %v968
        %v1026 = vpack.c.bf16 %v1003, %v993
        %v1027 = vpack.c.bf16 %v1004, %v994
        %v1028 = vpack.c.bf16 %v1016, %v1016
        %v1029 = vpack.c.bf16 %v1017, %v1017
        %v1030 = vld [vmem:[%s5] sm:$0xf]
        %v1031 = vld [vmem:[%s6] sm:$0xff]
        %1033 = vset.pattern.permute.xlu0 0
        %1034 = vperm.xlu0 %1033, %v1031
        %v1035 = vpop.permute.xlu0 %1034
        %vm1037 = vcmask 588800
        %v1039 = vsel %vm1037, %v1030, 0
        %vm1041 = vcmask 1043456
        %v1043 = vsel %vm1041, %v1028, 0
        %v1046 = vsel %vm1041, %v1029, 0
        %1048 = vmatprep.subr.bf16.mxu0 %v1021
        %1049 = vmatpush1.bf16.msra.mxu0 %v1020
        %1050 = vmatprep.subr.bf16.mxu0 %v1023
        %1051 = vmatpush1.bf16.msra.mxu0 %v1022
        %1052 = vmatprep.subr.bf16.mxu0 %v1025
        %1053 = vmatpush1.bf16.msra.mxu0 %v1024
        %1054 = vmatprep.subr.bf16.mxu0 %v1027
        %1055 = vmatpush1.bf16.msra.mxu0 %v1026
        %1056 = vmatprep.subr.bf16.mxu0 %v1046
        %1057 = vmatpush1.bf16.msra.mxu0 %v1043
        %1058 = vmatprep.subr.bf16.mxu0 0
        %1059 = vmatpush1.bf16.msra.mxu0 0
        %1060 = vmatprep.subr.bf16.mxu0 0
        %1061 = vmatpush1.bf16.msra.mxu0 0
        %1062 = vmatprep.subr.bf16.mxu0 0
        %1063 = vmatpush1.bf16.msra.mxu0 0
        %1064 = vmatprep.subr.bf16.mxu0 0
        %1065 = vmatpush1.bf16.msra.mxu0 0
        %1066 = vmatprep.subr.bf16.mxu0 0
        %1067 = vmatpush1.bf16.msra.mxu0 0
        %1068 = vmatprep.subr.bf16.mxu0 0
        %1069 = vmatpush1.bf16.msra.mxu0 0
        %1070 = vmatprep.subr.bf16.mxu0 0
        %1071 = vmatpush1.bf16.msra.mxu0 0
        %1072 = vmatprep.subr.bf16.mxu0 0
        %1073 = vmatpush1.bf16.msra.mxu0 0
        %1074 = vmatprep.subr.bf16.mxu0 0
        %1075 = vmatpush1.bf16.msra.mxu0 0
        %1076 = vmatprep.subr.bf16.mxu0 0
        %1077 = vmatpush1.bf16.msra.mxu0 0
        %1078 = vmatprep.subr.bf16.mxu0 0
        %1079 = vmatpush1.bf16.msra.mxu0 0
        %1080 = vmatprep.mubr.bf16.mxu0 0
        %1081 = vmatmul.mubr.bf16.gmra.mrb[0].mxu0 %v1039
        %v1082 = vpop.f32.mrb[0].mxu0
        %v1083 = vadd.f32 %v1035, %v1082
        %v1084 = vpop.f32.mrb[0].mxu0
        %v1085 = vadd.f32 %v1035, %v1084
        %v1086 = vpop.f32.mrb[0].mxu0
        %v1087 = vpop.f32.mrb[0].mxu0
        %1088 = vdwg.mxu0
        %v1089 = vmax.f32 %v1083, 0.0
        %v1090 = vmax.f32 %v1085, 0.0
        %1093 = vrot.lane.b32.xlu0 %v1089, 17
        %v1094 = vpop.permute.xlu0 %1093
        %1095 = vrot.lane.b32.xlu0 %v1090, 17
        %v1096 = vpop.permute.xlu0 %1095
        %v1097 = vsel %vm440, %v1094, %v1096
        %1101 = vst.msk [vmem:[#allocation2] sm:$0xff] %vm577, %v1094
        %1102 = vst [vmem:[#allocation2 + $0x8] sm:$0xff] %v1097
        %1103 = vst.msk [vmem:[#allocation2 + $0x10] sm:$0xff] %vm440, %v1096
        %v1104 = vld [vmem:[#allocation2] sm:$0xfc]
        %v1105 = vld [vmem:[#allocation2 + $0x8] sm:$0xfc]
        %v1106 = vmul.f32 %v1104, %v481
        %v1107 = vmul.f32 %v1105, %v482
        %v1108 = vld [vmem:[#allocation2 + $0x10] sm:$0xfc]
        %v1109 = vmul.f32 %v1104, %v589
        %v1110 = vmul.f32 %v1105, %v593
        %v1111 = vmul.f32 %v1108, %v591
        %v1112 = vmul.f32 %v1104, %v603
        %v1113 = vmul.f32 %v1105, %v607
        %v1114 = vmul.f32 %v1108, %v605
        %v1115 = vmul.f32 %v1104, %v615
        %v1116 = vmul.f32 %v1105, %v619
        %v1117 = vmul.f32 %v1108, %v617
        %v1118 = vmul.f32 %v1104, %v627
        %v1119 = vmul.f32 %v1105, %v630
        %v1120 = vmul.f32 %v1108, %v629
        %v1121 = vmul.f32 %v1104, %v638
        %v1122 = vmul.f32 %v1105, %v642
        %v1123 = vmul.f32 %v1108, %v640
        %v1124 = vld [vmem:[%s7] sm:$0x3f]
        %1126 = vset.pattern.permute.xlu0 0
        %1127 = vperm.xlu0 %1126, %v1124
        %v1128 = vpop.permute.xlu0 %1127
        %v1132 = vrot.slane %v1106, 2
        %v1133 = vrot.slane %v1107, 2
        %v1136 = vmul.f32 %v1128, %v1132
        %v1137 = vmul.f32 %v1128, %v1133
        %s1138 = scalar_lea.vmem %s7, 8
        %v1139 = vld [vmem:[%s1138] sm:$0x3f]
        %1141 = vset.pattern.permute.xlu0 0
        %1142 = vperm.xlu0 %1141, %v1139
        %v1143 = vpop.permute.xlu0 %1142
        %v1148 = vrot.slane %v1104, 2
        %v1149 = vrot.slane %v1105, 2
        %v1150 = vrot.slane %v1108, 2
        %1151 = vrot.lane.b32.xlu0 %v1148, 127
        %v1152 = vpop.permute.xlu0 %1151
        %1153 = vrot.lane.b32.xlu0 %v1149, 127
        %v1154 = vpop.permute.xlu0 %1153
        %1155 = vrot.lane.b32.xlu0 %v1150, 127
        %v1156 = vpop.permute.xlu0 %1155
        %v1157 = vsel %vm682, %v1152, %v1154
        %v1158 = vsel %vm682, %v1154, %v1156
        %v1161 = vmul.f32 %v1143, %v1157
        %v1162 = vmul.f32 %v1143, %v1158
        %v1163 = vadd.f32 %v1136, %v1161
        %v1164 = vadd.f32 %v1137, %v1162
        %s1165 = scalar_lea.vmem %s7, 16
        %v1166 = vld [vmem:[%s1165] sm:$0x3f]
        %1168 = vset.pattern.permute.xlu0 0
        %1169 = vperm.xlu0 %1168, %v1166
        %v1170 = vpop.permute.xlu0 %1169
        %v1175 = vrot.slane %v1109, 2
        %v1176 = vrot.slane %v1110, 2
        %v1177 = vrot.slane %v1111, 2
        %1178 = vrot.lane.b32.xlu0 %v1175, 126
        %v1179 = vpop.permute.xlu0 %1178
        %1180 = vrot.lane.b32.xlu0 %v1176, 126
        %v1181 = vpop.permute.xlu0 %1180
        %1182 = vrot.lane.b32.xlu0 %v1177, 126
        %v1183 = vpop.permute.xlu0 %1182
        %v1184 = vsel %vm710, %v1179, %v1181
        %v1185 = vsel %vm710, %v1181, %v1183
        %v1188 = vmul.f32 %v1170, %v1184
        %v1189 = vmul.f32 %v1170, %v1185
        %v1190 = vadd.f32 %v1163, %v1188
        %v1191 = vadd.f32 %v1164, %v1189
        %s1192 = scalar_lea.vmem %s7, 24
        %v1193 = vld [vmem:[%s1192] sm:$0x3f]
        %1195 = vset.pattern.permute.xlu0 0
        %1196 = vperm.xlu0 %1195, %v1193
        %v1197 = vpop.permute.xlu0 %1196
        %v1202 = vrot.slane %v1112, 2
        %v1203 = vrot.slane %v1113, 2
        %v1204 = vrot.slane %v1114, 2
        %1205 = vrot.lane.b32.xlu0 %v1202, 112
        %v1206 = vpop.permute.xlu0 %1205
        %1207 = vrot.lane.b32.xlu0 %v1203, 112
        %v1208 = vpop.permute.xlu0 %1207
        %1209 = vrot.lane.b32.xlu0 %v1204, 112
        %v1210 = vpop.permute.xlu0 %1209
        %v1211 = vsel %vm738, %v1206, %v1208
        %v1212 = vsel %vm738, %v1208, %v1210
        %v1215 = vmul.f32 %v1197, %v1211
        %v1216 = vmul.f32 %v1197, %v1212
        %v1217 = vadd.f32 %v1190, %v1215
        %v1218 = vadd.f32 %v1191, %v1216
        %s1219 = scalar_lea.vmem %s7, 32
        %v1220 = vld [vmem:[%s1219] sm:$0x3f]
        %1222 = vset.pattern.permute.xlu0 0
        %1223 = vperm.xlu0 %1222, %v1220
        %v1224 = vpop.permute.xlu0 %1223
        %1226 = vrot.lane.b32.xlu0 %v1148, 111
        %v1227 = vpop.permute.xlu0 %1226
        %1228 = vrot.lane.b32.xlu0 %v1149, 111
        %v1229 = vpop.permute.xlu0 %1228
        %1230 = vrot.lane.b32.xlu0 %v1150, 111
        %v1231 = vpop.permute.xlu0 %1230
        %v1232 = vsel %vm760, %v1227, %v1229
        %v1233 = vsel %vm760, %v1229, %v1231
        %v1236 = vmul.f32 %v1224, %v1232
        %v1237 = vmul.f32 %v1224, %v1233
        %v1238 = vadd.f32 %v1217, %v1236
        %v1239 = vadd.f32 %v1218, %v1237
        %s1240 = scalar_lea.vmem %s7, 40
        %v1241 = vld [vmem:[%s1240] sm:$0x3f]
        %1243 = vset.pattern.permute.xlu0 0
        %1244 = vperm.xlu0 %1243, %v1241
        %v1245 = vpop.permute.xlu0 %1244
        %v1250 = vrot.slane %v1115, 2
        %v1251 = vrot.slane %v1116, 2
        %v1252 = vrot.slane %v1117, 2
        %1253 = vrot.lane.b32.xlu0 %v1250, 110
        %v1254 = vpop.permute.xlu0 %1253
        %1255 = vrot.lane.b32.xlu0 %v1251, 110
        %v1256 = vpop.permute.xlu0 %1255
        %1257 = vrot.lane.b32.xlu0 %v1252, 110
        %v1258 = vpop.permute.xlu0 %1257
        %v1259 = vsel %vm788, %v1254, %v1256
        %v1260 = vsel %vm788, %v1256, %v1258
        %v1263 = vmul.f32 %v1245, %v1259
        %v1264 = vmul.f32 %v1245, %v1260
        %v1265 = vadd.f32 %v1238, %v1263
        %v1266 = vadd.f32 %v1239, %v1264
        %s1267 = scalar_lea.vmem %s7, 48
        %v1268 = vld [vmem:[%s1267] sm:$0x3f]
        %1270 = vset.pattern.permute.xlu0 0
        %1271 = vperm.xlu0 %1270, %v1268
        %v1272 = vpop.permute.xlu0 %1271
        %v1277 = vrot.slane %v1118, 2
        %v1278 = vrot.slane %v1119, 2
        %v1279 = vrot.slane %v1120, 2
        %1280 = vrot.lane.b32.xlu0 %v1277, 96
        %v1281 = vpop.permute.xlu0 %1280
        %1282 = vrot.lane.b32.xlu0 %v1278, 96
        %v1283 = vpop.permute.xlu0 %1282
        %1284 = vrot.lane.b32.xlu0 %v1279, 96
        %v1285 = vpop.permute.xlu0 %1284
        %v1286 = vsel %vm816, %v1281, %v1283
        %v1287 = vsel %vm816, %v1283, %v1285
        %v1290 = vmul.f32 %v1272, %v1286
        %v1291 = vmul.f32 %v1272, %v1287
        %v1292 = vadd.f32 %v1265, %v1290
        %v1293 = vadd.f32 %v1266, %v1291
        %s1294 = scalar_lea.vmem %s7, 56
        %v1295 = vld [vmem:[%s1294] sm:$0x3f]
        %1297 = vset.pattern.permute.xlu0 0
        %1298 = vperm.xlu0 %1297, %v1295
        %v1299 = vpop.permute.xlu0 %1298
        %1301 = vrot.lane.b32.xlu0 %v1148, 95
        %v1302 = vpop.permute.xlu0 %1301
        %1303 = vrot.lane.b32.xlu0 %v1149, 95
        %v1304 = vpop.permute.xlu0 %1303
        %1305 = vrot.lane.b32.xlu0 %v1150, 95
        %v1306 = vpop.permute.xlu0 %1305
        %v1307 = vsel %vm838, %v1302, %v1304
        %v1308 = vsel %vm838, %v1304, %v1306
        %v1311 = vmul.f32 %v1299, %v1307
        %v1312 = vmul.f32 %v1299, %v1308
        %v1313 = vadd.f32 %v1292, %v1311
        %v1314 = vadd.f32 %v1293, %v1312
        %s1315 = scalar_lea.vmem %s7, 64
        %v1316 = vld [vmem:[%s1315] sm:$0x3f]
        %1318 = vset.pattern.permute.xlu0 0
        %1319 = vperm.xlu0 %1318, %v1316
        %v1320 = vpop.permute.xlu0 %1319
        %v1325 = vrot.slane %v1121, 2
        %v1326 = vrot.slane %v1122, 2
        %v1327 = vrot.slane %v1123, 2
        %1328 = vrot.lane.b32.xlu0 %v1325, 94
        %v1329 = vpop.permute.xlu0 %1328
        %1330 = vrot.lane.b32.xlu0 %v1326, 94
        %v1331 = vpop.permute.xlu0 %1330
        %1332 = vrot.lane.b32.xlu0 %v1327, 94
        %v1333 = vpop.permute.xlu0 %1332
        %v1334 = vsel %vm866, %v1329, %v1331
        %v1335 = vsel %vm866, %v1331, %v1333
        %v1338 = vmul.f32 %v1320, %v1334
        %v1339 = vmul.f32 %v1320, %v1335
        %v1340 = vadd.f32 %v1313, %v1338
        %v1341 = vadd.f32 %v1314, %v1339
        %v1342 = vld [vmem:[%s8] sm:$0x3f]
        %1344 = vset.pattern.permute.xlu0 0
        %1345 = vperm.xlu0 %1344, %v1342
        %v1346 = vpop.permute.xlu0 %1345
        %v1348 = vadd.f32 %v1340, %v1346
        %v1349 = vadd.f32 %v1341, %v1346
        %v1350 = vmax.f32 %v1348, 0.0
        %v1351 = vmax.f32 %v1349, 0.0
        %v1354 = vrot.slane %v1350, 6
        %v1355 = vrot.slane %v1351, 6
        %1356 = vrot.lane.b32.xlu0 %v1354, 17
        %v1357 = vpop.permute.xlu0 %1356
        %1358 = vrot.lane.b32.xlu0 %v1355, 17
        %v1359 = vpop.permute.xlu0 %1358
        %v1360 = vsel %vm440, %v1357, %v1359
        %1364 = vst.msk [vmem:[#allocation2] sm:$0xfc] %vm897, %v1357
        %1365 = vst [vmem:[#allocation2 + $0x8] sm:$0xfc] %v1360
        %1366 = vst.msk [vmem:[#allocation2 + $0x10] sm:$0xfc] %vm900, %v1359
        %v1367 = vld [vmem:[#allocation2] sm:$0xff]
        %v1368 = vld [vmem:[#allocation2 + $0x8] sm:$0xff]
        %v1369 = vld [vmem:[#allocation2 + $0x10] sm:$0xff]
        %v1370 = vpack.c.bf16 %v1367, %v1367
        %v1371 = vpack.c.bf16 %v1368, %v1368
        %v1372 = vpack.c.bf16 %v1369, %v1369
        %v1373 = vld [vmem:[%s9] sm:$0xf]
        %v1374 = vld [vmem:[%s9 + $0x4] sm:$0xf]
        %v1375 = vld [vmem:[%s9 + $0x8] sm:$0xf]
        %v1376 = vld [vmem:[%s9 + $0xc] sm:$0xf]
        %v1377 = vld [vmem:[%s10] sm:$0xff]
        %v1378 = vld [vmem:[%s10 + $0x8] sm:$0xff]
        %v1379 = vld [vmem:[%s10 + $0x10] sm:$0xff]
        %v1380 = vld [vmem:[%s10 + $0x18] sm:$0xff]
        %1382 = vset.pattern.permute.xlu0 0
        %1383 = vperm.xlu0 %1382, %v1377
        %v1384 = vpop.permute.xlu0 %1383
        %1387 = vset.pattern.permute.xlu0 0
        %1388 = vperm.xlu0 %1387, %v1378
        %v1389 = vpop.permute.xlu0 %1388
        %1392 = vset.pattern.permute.xlu0 0
        %1393 = vperm.xlu0 %1392, %v1379
        %v1394 = vpop.permute.xlu0 %1393
        %1397 = vset.pattern.permute.xlu0 0
        %1398 = vperm.xlu0 %1397, %v1380
        %v1399 = vpop.permute.xlu0 %1398
        %v1405 = vunpack.c.l.b16 %v1373
        %v1406 = vunpack.c.l.b16 %v1374
        %v1407 = vunpack.c.l.b16 %v1375
        %v1408 = vunpack.c.l.b16 %v1376
        %v1409 = vpack.c.b16 %v1406, %v1405
        %v1410 = vpack.c.b16 %v1408, %v1407
        %1414 = vrot.lane.b32.xlu0 %v1370, 111
        %v1415 = vpop.permute.xlu0 %1414
        %1416 = vrot.lane.b32.xlu0 %v1371, 111
        %v1417 = vpop.permute.xlu0 %1416
        %1418 = vrot.lane.b32.xlu0 %v1372, 111
        %v1419 = vpop.permute.xlu0 %1418
        %vm1420 = vcmask 908288
        %v1421 = vsel %vm1420, %v1415, %v1417
        %v1422 = vsel %vm1420, %v1417, %v1419
        %vm1423 = vcmask 64512
        %v1425 = vsel %vm1423, %v1409, 0
        %v1428 = vsel %vm1423, %v1410, 0
        %v1431 = vsel %vm1041, %v1421, 0
        %v1434 = vsel %vm1041, %v1422, 0
        %1436 = vmatprep.subr.bf16.mxu0 %v1434
        %1437 = vmatpush1.bf16.msra.mxu0 %v1431
        %1438 = vmatprep.subr.bf16.mxu0 0
        %1439 = vmatpush1.bf16.msra.mxu0 0
        %1440 = vmatprep.subr.bf16.mxu0 0
        %1441 = vmatpush1.bf16.msra.mxu0 0
        %1442 = vmatprep.subr.bf16.mxu0 0
        %1443 = vmatpush1.bf16.msra.mxu0 0
        %1444 = vmatprep.subr.bf16.mxu0 0
        %1445 = vmatpush1.bf16.msra.mxu0 0
        %1446 = vmatprep.subr.bf16.mxu0 0
        %1447 = vmatpush1.bf16.msra.mxu0 0
        %1448 = vmatprep.subr.bf16.mxu0 0
        %1449 = vmatpush1.bf16.msra.mxu0 0
        %1450 = vmatprep.subr.bf16.mxu0 0
        %1451 = vmatpush1.bf16.msra.mxu0 0
        %1452 = vmatprep.subr.bf16.mxu0 0
        %1453 = vmatpush1.bf16.msra.mxu0 0
        %1454 = vmatprep.subr.bf16.mxu0 0
        %1455 = vmatpush1.bf16.msra.mxu0 0
        %1456 = vmatprep.subr.bf16.mxu0 0
        %1457 = vmatpush1.bf16.msra.mxu0 0
        %1458 = vmatprep.subr.bf16.mxu0 0
        %1459 = vmatpush1.bf16.msra.mxu0 0
        %1460 = vmatprep.subr.bf16.mxu0 0
        %1461 = vmatpush1.bf16.msra.mxu0 0
        %1462 = vmatprep.subr.bf16.mxu0 0
        %1463 = vmatpush1.bf16.msra.mxu0 0
        %1464 = vmatprep.subr.bf16.mxu0 0
        %1465 = vmatpush1.bf16.msra.mxu0 0
        %1466 = vmatprep.subr.bf16.mxu0 0
        %1467 = vmatpush1.bf16.msra.mxu0 0
        %1468 = vmatprep.mubr.bf16.mxu0 0
        %1469 = vmatmul.mubr.bf16.gmra.mrb[0].mxu0 %v1425
        %v1470 = vpop.f32.mrb[0].mxu0
        %v1471 = vadd.f32 %v1384, %v1470
        %v1472 = vpop.f32.mrb[0].mxu0
        %v1473 = vadd.f32 %v1384, %v1472
        %v1474 = vpop.f32.mrb[0].mxu0
        %v1475 = vadd.f32 %v1389, %v1474
        %v1476 = vpop.f32.mrb[0].mxu0
        %v1477 = vadd.f32 %v1389, %v1476
        %1478 = vmatprep.mubr.bf16.mxu0 0
        %1479 = vmatmul.mubr.bf16.gmra.mrb[0].mxu0 %v1428
        %v1480 = vpop.f32.mrb[0].mxu0
        %v1481 = vadd.f32 %v1394, %v1480
        %v1482 = vpop.f32.mrb[0].mxu0
        %v1483 = vadd.f32 %v1394, %v1482
        %v1484 = vpop.f32.mrb[0].mxu0
        %v1485 = vadd.f32 %v1399, %v1484
        %v1486 = vpop.f32.mrb[0].mxu0
        %v1487 = vadd.f32 %v1399, %v1486
        %1488 = vdwg.mxu0
        %1497 = vrot.lane.b32.xlu0 %v1471, 17
        %v1498 = vpop.permute.xlu0 %1497
        %1499 = vrot.lane.b32.xlu0 %v1473, 17
        %v1500 = vpop.permute.xlu0 %1499
        %1501 = vrot.lane.b32.xlu0 %v1475, 17
        %v1502 = vpop.permute.xlu0 %1501
        %1503 = vrot.lane.b32.xlu0 %v1477, 17
        %v1504 = vpop.permute.xlu0 %1503
        %1505 = vrot.lane.b32.xlu0 %v1481, 17
        %v1506 = vpop.permute.xlu0 %1505
        %1507 = vrot.lane.b32.xlu0 %v1483, 17
        %v1508 = vpop.permute.xlu0 %1507
        %1509 = vrot.lane.b32.xlu0 %v1485, 17
        %v1510 = vpop.permute.xlu0 %1509
        %1511 = vrot.lane.b32.xlu0 %v1487, 17
        %v1512 = vpop.permute.xlu0 %1511
        %v1513 = vsel %vm440, %v1498, %v1500
        %v1514 = vsel %vm440, %v1502, %v1504
        %v1515 = vsel %vm440, %v1506, %v1508
        %v1516 = vsel %vm440, %v1510, %v1512
        %1529 = vst.msk [vmem:[#allocation2] sm:$0xff] %vm577, %v1498
        %1530 = vst [vmem:[#allocation2 + $0x8] sm:$0xff] %v1513
        %1531 = vst.msk [vmem:[#allocation2 + $0x10] sm:$0xff] %vm440, %v1500
        %1532 = vst.msk [vmem:[#allocation2 + $0x18] sm:$0xff] %vm577, %v1502
        %1533 = vst [vmem:[#allocation2 + $0x20] sm:$0xff] %v1514
        %1534 = vst.msk [vmem:[#allocation2 + $0x28] sm:$0xff] %vm440, %v1504
        %1535 = vst.msk [vmem:[#allocation2 + $0x30] sm:$0xff] %vm577, %v1506
        %1536 = vst [vmem:[#allocation2 + $0x38] sm:$0xff] %v1515
        %1537 = vst.msk [vmem:[#allocation2 + $0x40] sm:$0xff] %vm440, %v1508
        %1538 = vst.msk [vmem:[#allocation2 + $0x48] sm:$0xff] %vm577, %v1510
        %1539 = vst [vmem:[#allocation2 + $0x50] sm:$0xff] %v1516
        %1540 = vst.msk [vmem:[#allocation2 + $0x58] sm:$0xff] %vm440, %v1512
        %v1541 = vld [vmem:[#allocation2 + $0x18] sm:$0xff]
        %v1542 = vld [vmem:[#allocation2 + $0x20] sm:$0xff]
        %v1543 = vld [vmem:[#allocation2 + $0x30] sm:$0xff]
        %v1544 = vld [vmem:[#allocation2 + $0x38] sm:$0xff]
        %v1545 = vld [vmem:[#allocation2 + $0x48] sm:$0xff]
        %v1546 = vld [vmem:[#allocation2 + $0x50] sm:$0xff]
        %v1547 = vmul.f32 %v1541, %v481
        %v1548 = vmul.f32 %v1542, %v482
        %v1549 = vmul.f32 %v1543, %v481
        %v1550 = vmul.f32 %v1544, %v482
        %v1551 = vmul.f32 %v1545, %v481
        %v1552 = vmul.f32 %v1546, %v482
        %v1553 = vld [vmem:[#allocation2 + $0x28] sm:$0xff]
        %v1554 = vld [vmem:[#allocation2 + $0x40] sm:$0xff]
        %v1555 = vld [vmem:[#allocation2 + $0x58] sm:$0xff]
        %v1556 = vmul.f32 %v1541, %v589
        %v1557 = vmul.f32 %v1542, %v593
        %v1558 = vmul.f32 %v1553, %v591
        %v1559 = vmul.f32 %v1543, %v589
        %v1560 = vmul.f32 %v1544, %v593
        %v1561 = vmul.f32 %v1554, %v591
        %v1562 = vmul.f32 %v1545, %v589
        %v1563 = vmul.f32 %v1546, %v593
        %v1564 = vmul.f32 %v1555, %v591
        %v1565 = vmul.f32 %v1541, %v603
        %v1566 = vmul.f32 %v1542, %v607
        %v1567 = vmul.f32 %v1553, %v605
        %v1568 = vmul.f32 %v1543, %v603
        %v1569 = vmul.f32 %v1544, %v607
        %v1570 = vmul.f32 %v1554, %v605
        %v1571 = vmul.f32 %v1545, %v603
        %v1572 = vmul.f32 %v1546, %v607
        %v1573 = vmul.f32 %v1555, %v605
        %v1574 = vmul.f32 %v1541, %v615
        %v1575 = vmul.f32 %v1542, %v619
        %v1576 = vmul.f32 %v1553, %v617
        %v1577 = vmul.f32 %v1543, %v615
        %v1578 = vmul.f32 %v1544, %v619
        %v1579 = vmul.f32 %v1554, %v617
        %v1580 = vmul.f32 %v1545, %v615
        %v1581 = vmul.f32 %v1546, %v619
        %v1582 = vmul.f32 %v1555, %v617
        %v1583 = vmul.f32 %v1541, %v627
        %v1584 = vmul.f32 %v1542, %v630
        %v1585 = vmul.f32 %v1553, %v629
        %v1586 = vmul.f32 %v1543, %v627
        %v1587 = vmul.f32 %v1544, %v630
        %v1588 = vmul.f32 %v1554, %v629
        %v1589 = vmul.f32 %v1545, %v627
        %v1590 = vmul.f32 %v1546, %v630
        %v1591 = vmul.f32 %v1555, %v629
        %v1592 = vmul.f32 %v1541, %v638
        %v1593 = vmul.f32 %v1542, %v642
        %v1594 = vmul.f32 %v1553, %v640
        %v1595 = vmul.f32 %v1543, %v638
        %v1596 = vmul.f32 %v1544, %v642
        %v1597 = vmul.f32 %v1554, %v640
        %v1598 = vmul.f32 %v1545, %v638
        %v1599 = vmul.f32 %v1546, %v642
        %v1600 = vmul.f32 %v1555, %v640
        %v1601 = vld [vmem:[%s11] sm:$0xff]
        %v1602 = vld [vmem:[%s11 + $0x8] sm:$0xff]
        %v1603 = vld [vmem:[%s11 + $0x10] sm:$0xff]
        %1605 = vset.pattern.permute.xlu0 0
        %1606 = vperm.xlu0 %1605, %v1601
        %v1607 = vpop.permute.xlu0 %1606
        %1610 = vset.pattern.permute.xlu0 0
        %1611 = vperm.xlu0 %1610, %v1602
        %v1612 = vpop.permute.xlu0 %1611
        %1615 = vset.pattern.permute.xlu0 0
        %1616 = vperm.xlu0 %1615, %v1603
        %v1617 = vpop.permute.xlu0 %1616
        %v1619 = vmul.f32 %v1607, %v1547
        %v1620 = vmul.f32 %v1607, %v1548
        %v1621 = vmul.f32 %v1612, %v1549
        %v1622 = vmul.f32 %v1612, %v1550
        %v1623 = vmul.f32 %v1617, %v1551
        %v1624 = vmul.f32 %v1617, %v1552
        %s1625 = scalar_lea.vmem %s11, 24
        %v1626 = vld [vmem:[%s1625] sm:$0xff]
        %v1627 = vld [vmem:[%s1625 + $0x8] sm:$0xff]
        %v1628 = vld [vmem:[%s1625 + $0x10] sm:$0xff]
        %1630 = vset.pattern.permute.xlu0 0
        %1631 = vperm.xlu0 %1630, %v1626
        %v1632 = vpop.permute.xlu0 %1631
        %1635 = vset.pattern.permute.xlu0 0
        %1636 = vperm.xlu0 %1635, %v1627
        %v1637 = vpop.permute.xlu0 %1636
        %1640 = vset.pattern.permute.xlu0 0
        %1641 = vperm.xlu0 %1640, %v1628
        %v1642 = vpop.permute.xlu0 %1641
        %v1644 = vmul.f32 %v1632, %v1541
        %v1645 = vmul.f32 %v1632, %v1542
        %v1646 = vmul.f32 %v1632, %v1553
        %v1647 = vmul.f32 %v1637, %v1543
        %v1648 = vmul.f32 %v1637, %v1544
        %v1649 = vmul.f32 %v1637, %v1554
        %v1650 = vmul.f32 %v1642, %v1545
        %v1651 = vmul.f32 %v1642, %v1546
        %v1652 = vmul.f32 %v1642, %v1555
        %1662 = vrot.lane.b32.xlu0 %v1644, 127
        %v1663 = vpop.permute.xlu0 %1662
        %1664 = vrot.lane.b32.xlu0 %v1645, 127
        %v1665 = vpop.permute.xlu0 %1664
        %1666 = vrot.lane.b32.xlu0 %v1646, 127
        %v1667 = vpop.permute.xlu0 %1666
        %1668 = vrot.lane.b32.xlu0 %v1647, 127
        %v1669 = vpop.permute.xlu0 %1668
        %1670 = vrot.lane.b32.xlu0 %v1648, 127
        %v1671 = vpop.permute.xlu0 %1670
        %1672 = vrot.lane.b32.xlu0 %v1649, 127
        %v1673 = vpop.permute.xlu0 %1672
        %1674 = vrot.lane.b32.xlu0 %v1650, 127
        %v1675 = vpop.permute.xlu0 %1674
        %1676 = vrot.lane.b32.xlu0 %v1651, 127
        %v1677 = vpop.permute.xlu0 %1676
        %1678 = vrot.lane.b32.xlu0 %v1652, 127
        %v1679 = vpop.permute.xlu0 %1678
        %v1680 = vsel %vm682, %v1663, %v1665
        %v1681 = vsel %vm682, %v1665, %v1667
        %v1682 = vsel %vm682, %v1669, %v1671
        %v1683 = vsel %vm682, %v1671, %v1673
        %v1684 = vsel %vm682, %v1675, %v1677
        %v1685 = vsel %vm682, %v1677, %v1679
        %v1692 = vadd.f32 %v1619, %v1680
        %v1693 = vadd.f32 %v1620, %v1681
        %v1694 = vadd.f32 %v1621, %v1682
        %v1695 = vadd.f32 %v1622, %v1683
        %v1696 = vadd.f32 %v1623, %v1684
        %v1697 = vadd.f32 %v1624, %v1685
        %s1698 = scalar_lea.vmem %s11, 48
        %v1699 = vld [vmem:[%s1698] sm:$0xff]
        %v1700 = vld [vmem:[%s1698 + $0x8] sm:$0xff]
        %v1701 = vld [vmem:[%s1698 + $0x10] sm:$0xff]
        %1703 = vset.pattern.permute.xlu0 0
        %1704 = vperm.xlu0 %1703, %v1699
        %v1705 = vpop.permute.xlu0 %1704
        %1708 = vset.pattern.permute.xlu0 0
        %1709 = vperm.xlu0 %1708, %v1700
        %v1710 = vpop.permute.xlu0 %1709
        %1713 = vset.pattern.permute.xlu0 0
        %1714 = vperm.xlu0 %1713, %v1701
        %v1715 = vpop.permute.xlu0 %1714
        %v1717 = vmul.f32 %v1705, %v1556
        %v1718 = vmul.f32 %v1705, %v1557
        %v1719 = vmul.f32 %v1705, %v1558
        %v1720 = vmul.f32 %v1710, %v1559
        %v1721 = vmul.f32 %v1710, %v1560
        %v1722 = vmul.f32 %v1710, %v1561
        %v1723 = vmul.f32 %v1715, %v1562
        %v1724 = vmul.f32 %v1715, %v1563
        %v1725 = vmul.f32 %v1715, %v1564
        %1735 = vrot.lane.b32.xlu0 %v1717, 126
        %v1736 = vpop.permute.xlu0 %1735
        %1737 = vrot.lane.b32.xlu0 %v1718, 126
        %v1738 = vpop.permute.xlu0 %1737
        %1739 = vrot.lane.b32.xlu0 %v1719, 126
        %v1740 = vpop.permute.xlu0 %1739
        %1741 = vrot.lane.b32.xlu0 %v1720, 126
        %v1742 = vpop.permute.xlu0 %1741
        %1743 = vrot.lane.b32.xlu0 %v1721, 126
        %v1744 = vpop.permute.xlu0 %1743
        %1745 = vrot.lane.b32.xlu0 %v1722, 126
        %v1746 = vpop.permute.xlu0 %1745
        %1747 = vrot.lane.b32.xlu0 %v1723, 126
        %v1748 = vpop.permute.xlu0 %1747
        %1749 = vrot.lane.b32.xlu0 %v1724, 126
        %v1750 = vpop.permute.xlu0 %1749
        %1751 = vrot.lane.b32.xlu0 %v1725, 126
        %v1752 = vpop.permute.xlu0 %1751
        %v1753 = vsel %vm710, %v1736, %v1738
        %v1754 = vsel %vm710, %v1738, %v1740
        %v1755 = vsel %vm710, %v1742, %v1744
        %v1756 = vsel %vm710, %v1744, %v1746
        %v1757 = vsel %vm710, %v1748, %v1750
        %v1758 = vsel %vm710, %v1750, %v1752
        %v1765 = vadd.f32 %v1692, %v1753
        %v1766 = vadd.f32 %v1693, %v1754
        %v1767 = vadd.f32 %v1694, %v1755
        %v1768 = vadd.f32 %v1695, %v1756
        %v1769 = vadd.f32 %v1696, %v1757
        %v1770 = vadd.f32 %v1697, %v1758
        %s1771 = scalar_lea.vmem %s11, 72
        %v1772 = vld [vmem:[%s1771] sm:$0xff]
        %v1773 = vld [vmem:[%s1771 + $0x8] sm:$0xff]
        %v1774 = vld [vmem:[%s1771 + $0x10] sm:$0xff]
        %1776 = vset.pattern.permute.xlu0 0
        %1777 = vperm.xlu0 %1776, %v1772
        %v1778 = vpop.permute.xlu0 %1777
        %1781 = vset.pattern.permute.xlu0 0
        %1782 = vperm.xlu0 %1781, %v1773
        %v1783 = vpop.permute.xlu0 %1782
        %1786 = vset.pattern.permute.xlu0 0
        %1787 = vperm.xlu0 %1786, %v1774
        %v1788 = vpop.permute.xlu0 %1787
        %v1790 = vmul.f32 %v1778, %v1565
        %v1791 = vmul.f32 %v1778, %v1566
        %v1792 = vmul.f32 %v1778, %v1567
        %v1793 = vmul.f32 %v1783, %v1568
        %v1794 = vmul.f32 %v1783, %v1569
        %v1795 = vmul.f32 %v1783, %v1570
        %v1796 = vmul.f32 %v1788, %v1571
        %v1797 = vmul.f32 %v1788, %v1572
        %v1798 = vmul.f32 %v1788, %v1573
        %1808 = vrot.lane.b32.xlu0 %v1790, 112
        %v1809 = vpop.permute.xlu0 %1808
        %1810 = vrot.lane.b32.xlu0 %v1791, 112
        %v1811 = vpop.permute.xlu0 %1810
        %1812 = vrot.lane.b32.xlu0 %v1792, 112
        %v1813 = vpop.permute.xlu0 %1812
        %1814 = vrot.lane.b32.xlu0 %v1793, 112
        %v1815 = vpop.permute.xlu0 %1814
        %1816 = vrot.lane.b32.xlu0 %v1794, 112
        %v1817 = vpop.permute.xlu0 %1816
        %1818 = vrot.lane.b32.xlu0 %v1795, 112
        %v1819 = vpop.permute.xlu0 %1818
        %1820 = vrot.lane.b32.xlu0 %v1796, 112
        %v1821 = vpop.permute.xlu0 %1820
        %1822 = vrot.lane.b32.xlu0 %v1797, 112
        %v1823 = vpop.permute.xlu0 %1822
        %1824 = vrot.lane.b32.xlu0 %v1798, 112
        %v1825 = vpop.permute.xlu0 %1824
        %v1826 = vsel %vm738, %v1809, %v1811
        %v1827 = vsel %vm738, %v1811, %v1813
        %v1828 = vsel %vm738, %v1815, %v1817
        %v1829 = vsel %vm738, %v1817, %v1819
        %v1830 = vsel %vm738, %v1821, %v1823
        %v1831 = vsel %vm738, %v1823, %v1825
        %v1838 = vadd.f32 %v1765, %v1826
        %v1839 = vadd.f32 %v1766, %v1827
        %v1840 = vadd.f32 %v1767, %v1828
        %v1841 = vadd.f32 %v1768, %v1829
        %v1842 = vadd.f32 %v1769, %v1830
        %v1843 = vadd.f32 %v1770, %v1831
        %s1844 = scalar_lea.vmem %s11, 96
        %v1845 = vld [vmem:[%s1844] sm:$0xff]
        %v1846 = vld [vmem:[%s1844 + $0x8] sm:$0xff]
        %v1847 = vld [vmem:[%s1844 + $0x10] sm:$0xff]
        %1849 = vset.pattern.permute.xlu0 0
        %1850 = vperm.xlu0 %1849, %v1845
        %v1851 = vpop.permute.xlu0 %1850
        %1854 = vset.pattern.permute.xlu0 0
        %1855 = vperm.xlu0 %1854, %v1846
        %v1856 = vpop.permute.xlu0 %1855
        %1859 = vset.pattern.permute.xlu0 0
        %1860 = vperm.xlu0 %1859, %v1847
        %v1861 = vpop.permute.xlu0 %1860
        %v1863 = vmul.f32 %v1851, %v1541
        %v1864 = vmul.f32 %v1851, %v1542
        %v1865 = vmul.f32 %v1851, %v1553
        %v1866 = vmul.f32 %v1856, %v1543
        %v1867 = vmul.f32 %v1856, %v1544
        %v1868 = vmul.f32 %v1856, %v1554
        %v1869 = vmul.f32 %v1861, %v1545
        %v1870 = vmul.f32 %v1861, %v1546
        %v1871 = vmul.f32 %v1861, %v1555
        %1881 = vrot.lane.b32.xlu0 %v1863, 111
        %v1882 = vpop.permute.xlu0 %1881
        %1883 = vrot.lane.b32.xlu0 %v1864, 111
        %v1884 = vpop.permute.xlu0 %1883
        %1885 = vrot.lane.b32.xlu0 %v1865, 111
        %v1886 = vpop.permute.xlu0 %1885
        %1887 = vrot.lane.b32.xlu0 %v1866, 111
        %v1888 = vpop.permute.xlu0 %1887
        %1889 = vrot.lane.b32.xlu0 %v1867, 111
        %v1890 = vpop.permute.xlu0 %1889
        %1891 = vrot.lane.b32.xlu0 %v1868, 111
        %v1892 = vpop.permute.xlu0 %1891
        %1893 = vrot.lane.b32.xlu0 %v1869, 111
        %v1894 = vpop.permute.xlu0 %1893
        %1895 = vrot.lane.b32.xlu0 %v1870, 111
        %v1896 = vpop.permute.xlu0 %1895
        %1897 = vrot.lane.b32.xlu0 %v1871, 111
        %v1898 = vpop.permute.xlu0 %1897
        %v1899 = vsel %vm760, %v1882, %v1884
        %v1900 = vsel %vm760, %v1884, %v1886
        %v1901 = vsel %vm760, %v1888, %v1890
        %v1902 = vsel %vm760, %v1890, %v1892
        %v1903 = vsel %vm760, %v1894, %v1896
        %v1904 = vsel %vm760, %v1896, %v1898
        %v1911 = vadd.f32 %v1838, %v1899
        %v1912 = vadd.f32 %v1839, %v1900
        %v1913 = vadd.f32 %v1840, %v1901
        %v1914 = vadd.f32 %v1841, %v1902
        %v1915 = vadd.f32 %v1842, %v1903
        %v1916 = vadd.f32 %v1843, %v1904
        %s1917 = scalar_lea.vmem %s11, 120
        %v1918 = vld [vmem:[%s1917] sm:$0xff]
        %v1919 = vld [vmem:[%s1917 + $0x8] sm:$0xff]
        %v1920 = vld [vmem:[%s1917 + $0x10] sm:$0xff]
        %1922 = vset.pattern.permute.xlu0 0
        %1923 = vperm.xlu0 %1922, %v1918
        %v1924 = vpop.permute.xlu0 %1923
        %1927 = vset.pattern.permute.xlu0 0
        %1928 = vperm.xlu0 %1927, %v1919
        %v1929 = vpop.permute.xlu0 %1928
        %1932 = vset.pattern.permute.xlu0 0
        %1933 = vperm.xlu0 %1932, %v1920
        %v1934 = vpop.permute.xlu0 %1933
        %v1936 = vmul.f32 %v1924, %v1574
        %v1937 = vmul.f32 %v1924, %v1575
        %v1938 = vmul.f32 %v1924, %v1576
        %v1939 = vmul.f32 %v1929, %v1577
        %v1940 = vmul.f32 %v1929, %v1578
        %v1941 = vmul.f32 %v1929, %v1579
        %v1942 = vmul.f32 %v1934, %v1580
        %v1943 = vmul.f32 %v1934, %v1581
        %v1944 = vmul.f32 %v1934, %v1582
        %1954 = vrot.lane.b32.xlu0 %v1936, 110
        %v1955 = vpop.permute.xlu0 %1954
        %1956 = vrot.lane.b32.xlu0 %v1937, 110
        %v1957 = vpop.permute.xlu0 %1956
        %1958 = vrot.lane.b32.xlu0 %v1938, 110
        %v1959 = vpop.permute.xlu0 %1958
        %1960 = vrot.lane.b32.xlu0 %v1939, 110
        %v1961 = vpop.permute.xlu0 %1960
        %1962 = vrot.lane.b32.xlu0 %v1940, 110
        %v1963 = vpop.permute.xlu0 %1962
        %1964 = vrot.lane.b32.xlu0 %v1941, 110
        %v1965 = vpop.permute.xlu0 %1964
        %1966 = vrot.lane.b32.xlu0 %v1942, 110
        %v1967 = vpop.permute.xlu0 %1966
        %1968 = vrot.lane.b32.xlu0 %v1943, 110
        %v1969 = vpop.permute.xlu0 %1968
        %1970 = vrot.lane.b32.xlu0 %v1944, 110
        %v1971 = vpop.permute.xlu0 %1970
        %v1972 = vsel %vm788, %v1955, %v1957
        %v1973 = vsel %vm788, %v1957, %v1959
        %v1974 = vsel %vm788, %v1961, %v1963
        %v1975 = vsel %vm788, %v1963, %v1965
        %v1976 = vsel %vm788, %v1967, %v1969
        %v1977 = vsel %vm788, %v1969, %v1971
        %v1984 = vadd.f32 %v1911, %v1972
        %v1985 = vadd.f32 %v1912, %v1973
        %v1986 = vadd.f32 %v1913, %v1974
        %v1987 = vadd.f32 %v1914, %v1975
        %v1988 = vadd.f32 %v1915, %v1976
        %v1989 = vadd.f32 %v1916, %v1977
        %s1990 = scalar_lea.vmem %s11, 144
        %v1991 = vld [vmem:[%s1990] sm:$0xff]
        %v1992 = vld [vmem:[%s1990 + $0x8] sm:$0xff]
        %v1993 = vld [vmem:[%s1990 + $0x10] sm:$0xff]
        %1995 = vset.pattern.permute.xlu0 0
        %1996 = vperm.xlu0 %1995, %v1991
        %v1997 = vpop.permute.xlu0 %1996
        %2000 = vset.pattern.permute.xlu0 0
        %2001 = vperm.xlu0 %2000, %v1992
        %v2002 = vpop.permute.xlu0 %2001
        %2005 = vset.pattern.permute.xlu0 0
        %2006 = vperm.xlu0 %2005, %v1993
        %v2007 = vpop.permute.xlu0 %2006
        %v2009 = vmul.f32 %v1997, %v1583
        %v2010 = vmul.f32 %v1997, %v1584
        %v2011 = vmul.f32 %v1997, %v1585
        %v2012 = vmul.f32 %v2002, %v1586
        %v2013 = vmul.f32 %v2002, %v1587
        %v2014 = vmul.f32 %v2002, %v1588
        %v2015 = vmul.f32 %v2007, %v1589
        %v2016 = vmul.f32 %v2007, %v1590
        %v2017 = vmul.f32 %v2007, %v1591
        %2027 = vrot.lane.b32.xlu0 %v2009, 96
        %v2028 = vpop.permute.xlu0 %2027
        %2029 = vrot.lane.b32.xlu0 %v2010, 96
        %v2030 = vpop.permute.xlu0 %2029
        %2031 = vrot.lane.b32.xlu0 %v2011, 96
        %v2032 = vpop.permute.xlu0 %2031
        %2033 = vrot.lane.b32.xlu0 %v2012, 96
        %v2034 = vpop.permute.xlu0 %2033
        %2035 = vrot.lane.b32.xlu0 %v2013, 96
        %v2036 = vpop.permute.xlu0 %2035
        %2037 = vrot.lane.b32.xlu0 %v2014, 96
        %v2038 = vpop.permute.xlu0 %2037
        %2039 = vrot.lane.b32.xlu0 %v2015, 96
        %v2040 = vpop.permute.xlu0 %2039
        %2041 = vrot.lane.b32.xlu0 %v2016, 96
        %v2042 = vpop.permute.xlu0 %2041
        %2043 = vrot.lane.b32.xlu0 %v2017, 96
        %v2044 = vpop.permute.xlu0 %2043
        %v2045 = vsel %vm816, %v2028, %v2030
        %v2046 = vsel %vm816, %v2030, %v2032
        %v2047 = vsel %vm816, %v2034, %v2036
        %v2048 = vsel %vm816, %v2036, %v2038
        %v2049 = vsel %vm816, %v2040, %v2042
        %v2050 = vsel %vm816, %v2042, %v2044
        %v2057 = vadd.f32 %v1984, %v2045
        %v2058 = vadd.f32 %v1985, %v2046
        %v2059 = vadd.f32 %v1986, %v2047
        %v2060 = vadd.f32 %v1987, %v2048
        %v2061 = vadd.f32 %v1988, %v2049
        %v2062 = vadd.f32 %v1989, %v2050
        %s2063 = scalar_lea.vmem %s11, 168
        %v2064 = vld [vmem:[%s2063] sm:$0xff]
        %v2065 = vld [vmem:[%s2063 + $0x8] sm:$0xff]
        %v2066 = vld [vmem:[%s2063 + $0x10] sm:$0xff]
        %2068 = vset.pattern.permute.xlu0 0
        %2069 = vperm.xlu0 %2068, %v2064
        %v2070 = vpop.permute.xlu0 %2069
        %2073 = vset.pattern.permute.xlu0 0
        %2074 = vperm.xlu0 %2073, %v2065
        %v2075 = vpop.permute.xlu0 %2074
        %2078 = vset.pattern.permute.xlu0 0
        %2079 = vperm.xlu0 %2078, %v2066
        %v2080 = vpop.permute.xlu0 %2079
        %v2082 = vmul.f32 %v2070, %v1541
        %v2083 = vmul.f32 %v2070, %v1542
        %v2084 = vmul.f32 %v2070, %v1553
        %v2085 = vmul.f32 %v2075, %v1543
        %v2086 = vmul.f32 %v2075, %v1544
        %v2087 = vmul.f32 %v2075, %v1554
        %v2088 = vmul.f32 %v2080, %v1545
        %v2089 = vmul.f32 %v2080, %v1546
        %v2090 = vmul.f32 %v2080, %v1555
        %2100 = vrot.lane.b32.xlu0 %v2082, 95
        %v2101 = vpop.permute.xlu0 %2100
        %2102 = vrot.lane.b32.xlu0 %v2083, 95
        %v2103 = vpop.permute.xlu0 %2102
        %2104 = vrot.lane.b32.xlu0 %v2084, 95
        %v2105 = vpop.permute.xlu0 %2104
        %2106 = vrot.lane.b32.xlu0 %v2085, 95
        %v2107 = vpop.permute.xlu0 %2106
        %2108 = vrot.lane.b32.xlu0 %v2086, 95
        %v2109 = vpop.permute.xlu0 %2108
        %2110 = vrot.lane.b32.xlu0 %v2087, 95
        %v2111 = vpop.permute.xlu0 %2110
        %2112 = vrot.lane.b32.xlu0 %v2088, 95
        %v2113 = vpop.permute.xlu0 %2112
        %2114 = vrot.lane.b32.xlu0 %v2089, 95
        %v2115 = vpop.permute.xlu0 %2114
        %2116 = vrot.lane.b32.xlu0 %v2090, 95
        %v2117 = vpop.permute.xlu0 %2116
        %v2118 = vsel %vm838, %v2101, %v2103
        %v2119 = vsel %vm838, %v2103, %v2105
        %v2120 = vsel %vm838, %v2107, %v2109
        %v2121 = vsel %vm838, %v2109, %v2111
        %v2122 = vsel %vm838, %v2113, %v2115
        %v2123 = vsel %vm838, %v2115, %v2117
        %v2130 = vadd.f32 %v2057, %v2118
        %v2131 = vadd.f32 %v2058, %v2119
        %v2132 = vadd.f32 %v2059, %v2120
        %v2133 = vadd.f32 %v2060, %v2121
        %v2134 = vadd.f32 %v2061, %v2122
        %v2135 = vadd.f32 %v2062, %v2123
        %s2136 = scalar_lea.vmem %s11, 192
        %v2137 = vld [vmem:[%s2136] sm:$0xff]
        %v2138 = vld [vmem:[%s2136 + $0x8] sm:$0xff]
        %v2139 = vld [vmem:[%s2136 + $0x10] sm:$0xff]
        %2141 = vset.pattern.permute.xlu0 0
        %2142 = vperm.xlu0 %2141, %v2137
        %v2143 = vpop.permute.xlu0 %2142
        %2146 = vset.pattern.permute.xlu0 0
        %2147 = vperm.xlu0 %2146, %v2138
        %v2148 = vpop.permute.xlu0 %2147
        %2151 = vset.pattern.permute.xlu0 0
        %2152 = vperm.xlu0 %2151, %v2139
        %v2153 = vpop.permute.xlu0 %2152
        %v2155 = vmul.f32 %v2143, %v1592
        %v2156 = vmul.f32 %v2143, %v1593
        %v2157 = vmul.f32 %v2143, %v1594
        %v2158 = vmul.f32 %v2148, %v1595
        %v2159 = vmul.f32 %v2148, %v1596
        %v2160 = vmul.f32 %v2148, %v1597
        %v2161 = vmul.f32 %v2153, %v1598
        %v2162 = vmul.f32 %v2153, %v1599
        %v2163 = vmul.f32 %v2153, %v1600
        %2173 = vrot.lane.b32.xlu0 %v2155, 94
        %v2174 = vpop.permute.xlu0 %2173
        %2175 = vrot.lane.b32.xlu0 %v2156, 94
        %v2176 = vpop.permute.xlu0 %2175
        %2177 = vrot.lane.b32.xlu0 %v2157, 94
        %v2178 = vpop.permute.xlu0 %2177
        %2179 = vrot.lane.b32.xlu0 %v2158, 94
        %v2180 = vpop.permute.xlu0 %2179
        %2181 = vrot.lane.b32.xlu0 %v2159, 94
        %v2182 = vpop.permute.xlu0 %2181
        %2183 = vrot.lane.b32.xlu0 %v2160, 94
        %v2184 = vpop.permute.xlu0 %2183
        %2185 = vrot.lane.b32.xlu0 %v2161, 94
        %v2186 = vpop.permute.xlu0 %2185
        %2187 = vrot.lane.b32.xlu0 %v2162, 94
        %v2188 = vpop.permute.xlu0 %2187
        %2189 = vrot.lane.b32.xlu0 %v2163, 94
        %v2190 = vpop.permute.xlu0 %2189
        %v2191 = vsel %vm866, %v2174, %v2176
        %v2192 = vsel %vm866, %v2176, %v2178
        %v2193 = vsel %vm866, %v2180, %v2182
        %v2194 = vsel %vm866, %v2182, %v2184
        %v2195 = vsel %vm866, %v2186, %v2188
        %v2196 = vsel %vm866, %v2188, %v2190
        %v2203 = vadd.f32 %v2130, %v2191
        %v2204 = vadd.f32 %v2131, %v2192
        %v2205 = vadd.f32 %v2132, %v2193
        %v2206 = vadd.f32 %v2133, %v2194
        %v2207 = vadd.f32 %v2134, %v2195
        %v2208 = vadd.f32 %v2135, %v2196
        %v2209 = vld [vmem:[%s12] sm:$0xff]
        %v2210 = vld [vmem:[%s12 + $0x8] sm:$0xff]
        %v2211 = vld [vmem:[%s12 + $0x10] sm:$0xff]
        %2213 = vset.pattern.permute.xlu0 0
        %2214 = vperm.xlu0 %2213, %v2209
        %v2215 = vpop.permute.xlu0 %2214
        %2218 = vset.pattern.permute.xlu0 0
        %2219 = vperm.xlu0 %2218, %v2210
        %v2220 = vpop.permute.xlu0 %2219
        %2223 = vset.pattern.permute.xlu0 0
        %2224 = vperm.xlu0 %2223, %v2211
        %v2225 = vpop.permute.xlu0 %2224
        %v2227 = vadd.f32 %v2203, %v2215
        %v2228 = vadd.f32 %v2204, %v2215
        %v2229 = vadd.f32 %v2205, %v2220
        %v2230 = vadd.f32 %v2206, %v2220
        %v2231 = vadd.f32 %v2207, %v2225
        %v2232 = vadd.f32 %v2208, %v2225
        %v2233 = vunpack.c.l.bf16 %v489
        %v2234 = vunpack.c.h.bf16 %v489
        %v2235 = vunpack.c.l.bf16 %v490
        %v2236 = vunpack.c.h.bf16 %v490
        %v2237 = vunpack.c.l.bf16 %v491
        %v2238 = vunpack.c.h.bf16 %v491
        %v2239 = vunpack.c.l.bf16 %v492
        %v2240 = vunpack.c.h.bf16 %v492
        %v2241 = vadd.f32 %v1471, %v2233
        %v2242 = vadd.f32 %v1473, %v2234
        %v2243 = vmax.f32 %v2241, 0.0
        %v2244 = vmax.f32 %v2242, 0.0
        %2245 = vst [vmem:[%s433] sm:$0xff] %v2243
        %2246 = vst [vmem:[%s433 + $0x8] sm:$0xff] %v2244
        %v2247 = vadd.f32 %v2227, %v2235
        %v2248 = vadd.f32 %v2228, %v2236
        %v2249 = vadd.f32 %v2229, %v2237
        %v2250 = vadd.f32 %v2230, %v2238
        %v2251 = vadd.f32 %v2231, %v2239
        %v2252 = vadd.f32 %v2232, %v2240
        %v2253 = vmax.f32 %v2247, 0.0
        %v2254 = vmax.f32 %v2248, 0.0
        %v2255 = vmax.f32 %v2249, 0.0
        %v2256 = vmax.f32 %v2250, 0.0
        %v2257 = vmax.f32 %v2251, 0.0
        %v2258 = vmax.f32 %v2252, 0.0
        %2259 = vst [vmem:[%s433 + $0x10] sm:$0xff] %v2253
        %2260 = vst [vmem:[%s433 + $0x18] sm:$0xff] %v2254
        %2261 = vst [vmem:[%s433 + $0x20] sm:$0xff] %v2255
        %2262 = vst [vmem:[%s433 + $0x28] sm:$0xff] %v2256
        %2263 = vst [vmem:[%s433 + $0x30] sm:$0xff] %v2257
        %2264 = vst [vmem:[%s433 + $0x38] sm:$0xff] %v2258
        %s2265 = sand.u32 %s313, 1
        %s2266 = scalar_lea.sflag [#allocation4], %s2265
        %s2267 = sand.u32 %s313, 1
        %s2268 = smul.addr %s2267, 64
        %s2269 = scalar_lea.vmem [#allocation3], %s2268
        // Predicated region
        $region73: #{tpu_custom_call.1} parent=71 // pred_check
          %p2270 = pneg %p323
        $region74: #{tpu_custom_call.1} parent=71 // pred_check_branch
          %2272 = sbr.rel (%p2270) target = $region76
        $region75: #{tpu_custom_call.1} parent=71 // pred_region
          %s2274 = ssub.s32 1024, 1024
          %2275 = vsyncadd %s2266, %s2274
          %s2276 = smul.addr %s27, 8
          %s2277 = smul.addr %s2276, 128
          %s2278 = scalar_lea.hbm %s13, %s2277
          %s2279 = sshll.u32 %s2269, 4
          %s2280 = int_to_ptr.vmem [resolvable:$true] %s2279
          %2285 = dma.vmem_to_hbm [thread:$0]  %s2280, 1024, %s2278, %s2266, 256, 256, 16
        $region76: #{tpu_custom_call.1} parent=71 // pred_fallthru
          _
      $region72: #{tpu_custom_call.1} parent=5 // pred_fallthru
        _
      %p2286 = scmp.le.s32.totalorder 2, %s22
      // Predicated region
      $region77: #{tpu_custom_call.1} parent=5 // pred_check
        %p2287 = pneg %p2286
      $region78: #{tpu_custom_call.1} parent=5 // pred_check_branch
        %2289 = sbr.rel (%p2287) target = $region80
      $region79: #{tpu_custom_call.1} parent=5 // pred_region
        %s2290 = ssub.s32 %s22, 2
        // Predicated region
        $region81: #{tpu_custom_call.1} parent=79 // pred_check
          %p2291 = pneg %p329
        $region82: #{tpu_custom_call.1} parent=79 // pred_check_branch
          %2293 = sbr.rel (%p2291) target = $region84
        $region83: #{tpu_custom_call.1} parent=79 // pred_region
          %s2294 = sand.u32 %s314, 1
          %s2295 = scalar_lea.sflag [#allocation4], %s2294
          %s2296 = sand.u32 %s314, 1
          %s2297 = smul.addr %s2296, 64
          %s2298 = scalar_lea.vmem [#allocation3], %s2297
          %2299 = dma.done %s2295, 1024
        $region84: #{tpu_custom_call.1} parent=79 // pred_fallthru
          _
      $region80: #{tpu_custom_call.1} parent=5 // pred_fallthru
        _
    $region6: #{tpu_custom_call.1} parent=1 // loop_footer
      %s26 = sadd.s32 1, %s22
    $region7: #{tpu_custom_call.1} parent=1 // loop_footer_branch
      %21 = sbr.rel target = $region3
    $region8: #{tpu_custom_call.1} parent=1 // loop_exit
      _
    %2300 = vsyncpa [#allocation4], 1
    %s2301 = scalar_lea.sflag [#allocation4], 1
    %2302 = vsyncpa %s2301, 1

</llo_original>
